<compile_context>
chip_gen: v5e
topology: v5e:2x2
jax: 0.10.0
libtpu: 0.0.40
codegen_flags: <defaults>
</compile_context>

<pallas_src>
import functools

import jax
import jax.numpy as jnp
from jax.experimental import pallas as pl
from jax.experimental.pallas import tpu as pltpu

# ----------------------------- model config ---------------------------------
EMBED_SIZE = 32
HIDDEN_SIZE = 32          # 4*H = 128 -> lane-aligned gate blocks
VOCAB_SIZE = 128          # lane-dense logits
NUM_LAYERS = 2
BATCH = 2
CAP_LEN = 9               # captions length; LSTM sees T = 1 + (CAP_LEN - 1)
SEQ_T = 1 + (CAP_LEN - 1)


# ------------------------------ Pallas kernel -------------------------------
def _decoder_lstm_fc_kernel(*refs, num_layers, hidden_size, seq_len, batch):
    L, H, T, B = num_layers, hidden_size, seq_len, batch

    x_ref = refs[0]                          # (T*B, E)   time-major flat input
    wih0_ref = refs[1]                       # (E, 4H)    layer-0 W_ih^T
    b0_ref = refs[2]                         # (1, 4H)    b_ih0 + b_hh0
    bfc_ref = refs[3]                        # (1, V)     fc bias
    wf_refs = refs[4:4 + L]                  # fused [W_hh_l | W_next] per layer
    bu_refs = refs[4 + L:4 + L + (L - 1)]    # (1, 4H) for layers 1..L-1
    out_ref = refs[-1]                       # (T*B, V)

    # Batched, NON-recurrent layer-0 input projection: one MXU matmul over all
    # T*B rows, bias folded in (hoisted off the serial recurrence chain).
    pre0 = (jnp.dot(x_ref[...], wih0_ref[...],
                    preferred_element_type=jnp.float32)
            + b0_ref[...])                                        # (T*B, 4H)

    # Fused recurrent weights (L * 8 vregs at H=32) + hoisted bias broadcasts.
    wf = [wf_refs[l][...] for l in range(L)]                      # (H, 4H + next)
    bu = [jnp.broadcast_to(bu_refs[l][...], (B, 4 * H)) for l in range(L - 1)]

    # PyTorch nn.LSTM default: h0 = c0 = 0.  State stays in vregs.
    h = [jnp.zeros((B, H), jnp.float32) for _ in range(L)]
    c = [jnp.zeros((B, H), jnp.float32) for _ in range(L)]
    # carry[l] = h_{t-1}^{(l)} @ W_hh_l  (left half of layer l's fused matmul,
    # produced at step t-1; zero at t=0 because h_{-1} = 0).
    carry = [jnp.zeros((B, 4 * H), jnp.float32) for _ in range(L)]

    tops = []                                # per-step h_{L-1} @ W_fc (pre-bias)
    for t in range(T):                       # static unroll; recurrence is serial
        below = pre0[t * B:(t + 1) * B, :]   # layer-0 gate pre-sums (bias inside)
        for l in range(L):                   # static unroll over layers
            gates = below + carry[l]                             # (B, 4H)
            if l > 0:
                gates = gates + bu[l - 1]

            # Two full-width EUP passes, then slice (PyTorch gate order i,f,g,o).
            sig = jax.nn.sigmoid(gates)
            tnh = jnp.tanh(gates)
            i_g = sig[:, 0 * H:1 * H]
            f_g = sig[:, 1 * H:2 * H]
            g_g = tnh[:, 2 * H:3 * H]
            o_g = sig[:, 3 * H:4 * H]

            c[l] = f_g * c[l] + i_g * g_g
            h[l] = o_g * jnp.tanh(c[l])

            # One fused 256-column MXU matmul: [W_hh_l | W_ih_{l+1}]
            # (last layer: [W_hh_{L-1} | W_fc]).  Left half is next step's
            # recurrent pre-sum; right half feeds the next layer / the logits.
            m = jnp.dot(h[l], wf[l], preferred_element_type=jnp.float32)
            carry[l] = m[:, :4 * H]
            below = m[:, 4 * H:]             # inter-layer dropout = identity (eval)
        tops.append(below)                   # (B, V)

    # Single lane-dense (T*B, V) store; fc bias broadcast added exactly once.
    logits = jnp.concatenate(tops, axis=0) + bfc_ref[...]
    out_ref[...] = logits.astype(out_ref.dtype)


def lstm_fc_pallas(x_flat, wih0_t, b0, bfc, wfused, bupper, *,
                   num_layers, hidden_size, seq_len, batch):
    """x_flat: (T*B, E) with row index t*B + b.  Returns logits (T*B, V)."""
    V = bfc.shape[-1]
    kernel = functools.partial(_decoder_lstm_fc_kernel,
                               num_layers=num_layers, hidden_size=hidden_size,
                               seq_len=seq_len, batch=batch)
    vmem = pl.BlockSpec(memory_space=pltpu.MemorySpace.VMEM)
    n_in = 4 + len(wfused) + len(bupper)
    # No grid: per-grid-step overhead (~0.35 us) would dwarf the compute, and
    # the whole footprint (~120 KB) fits trivially in VMEM on every generation.
    return pl.pallas_call(
        kernel,
        out_shape=jax.ShapeDtypeStruct((seq_len * batch, V), jnp.float32),
        in_specs=[vmem] * n_in,
        out_specs=vmem,
    )(x_flat, wih0_t, b0, bfc, *wfused, *bupper)


# ----------------------------- parameter setup ------------------------------
def init_params(key):
    ks = jax.random.split(key, 8)
    scale = 0.1
    embedding = scale * jax.random.normal(ks[0], (VOCAB_SIZE, EMBED_SIZE), jnp.float32)
    # Stacked LSTM weights (requires E == H so all layers share shapes).
    assert EMBED_SIZE == HIDDEN_SIZE
    wih = scale * jax.random.normal(ks[1], (NUM_LAYERS, 4 * HIDDEN_SIZE, EMBED_SIZE), jnp.float32)
    whh = scale * jax.random.normal(ks[2], (NUM_LAYERS, 4 * HIDDEN_SIZE, HIDDEN_SIZE), jnp.float32)
    bih = scale * jax.random.normal(ks[3], (NUM_LAYERS, 4 * HIDDEN_SIZE), jnp.float32)
    bhh = scale * jax.random.normal(ks[4], (NUM_LAYERS, 4 * HIDDEN_SIZE), jnp.float32)
    wfc = scale * jax.random.normal(ks[5], (VOCAB_SIZE, HIDDEN_SIZE), jnp.float32)
    bfc = scale * jax.random.normal(ks[6], (VOCAB_SIZE,), jnp.float32)
    return dict(embedding=embedding, wih=wih, whh=whh, bih=bih, bhh=bhh,
                wfc=wfc, bfc=bfc)


# ------------------------------ forward (wrapper) ---------------------------
def decoder_rnn_forward(features, captions, params):
    """features: (B, embed_size) f32; captions: (B, CAP_LEN) int32.
    Returns logits (B, T, vocab_size), T = 1 + (CAP_LEN - 1)."""
    # embedding lookup + eval-mode dropout (identity) -- plain-JAX glue
    emb = jnp.take(params["embedding"], captions[:, :-1], axis=0)     # (B, T-1, E)
    inputs = jnp.concatenate([features[:, None, :], emb], axis=1)     # (B, T, E)
    B, T, E = inputs.shape
    x_flat = jnp.transpose(inputs, (1, 0, 2)).reshape(T * B, E)       # row = t*B + b

    L, H = NUM_LAYERS, HIDDEN_SIZE
    wih_t = jnp.transpose(params["wih"], (0, 2, 1))                   # (L, E, 4H)
    whh_t = jnp.transpose(params["whh"], (0, 2, 1))                   # (L, H, 4H)
    wfc_t = params["wfc"].T                                           # (H, V)

    wih0_t = wih_t[0]                                                 # (E, 4H)
    b0 = (params["bih"][0] + params["bhh"][0])[None, :]               # (1, 4H)
    bfc = params["bfc"][None, :]                                      # (1, V)

    # 256-column fused recurrent weights: [W_hh_l | W_ih_{l+1}], last layer
    # gets [W_hh_{L-1} | W_fc].  Pre-concatenated here, loaded once in-kernel.
    wfused = []
    for l in range(L):
        right = wih_t[l + 1] if l < L - 1 else wfc_t
        wfused.append(jnp.concatenate([whh_t[l], right], axis=1))     # (H, 4H+next)
    bupper = [(params["bih"][l] + params["bhh"][l])[None, :] for l in range(1, L)]

    out_flat = lstm_fc_pallas(x_flat, wih0_t, b0, bfc, wfused, bupper,
                              num_layers=L, hidden_size=H, seq_len=T, batch=B)
    return jnp.transpose(out_flat.reshape(T, B, -1), (1, 0, 2))       # (B, T, V)


# ------------------------------ pure-JAX reference --------------------------
def decoder_rnn_reference(features, captions, params):
    emb = jnp.take(params["embedding"], captions[:, :-1], axis=0)
    inputs = jnp.concatenate([features[:, None, :], emb], axis=1)     # (B, T, E)
    B, T, _ = inputs.shape
    H = HIDDEN_SIZE
    h = jnp.zeros((NUM_LAYERS, B, H), jnp.float32)
    c = jnp.zeros((NUM_LAYERS, B, H), jnp.float32)
    outs = []
    for t in range(T):
        x = inputs[:, t, :]
        new_h, new_c = [], []
        for l in range(NUM_LAYERS):
            gates = (x @ params["wih"][l].T + params["bih"][l]
                     + h[l] @ params["whh"][l].T + params["bhh"][l])
            i_g = jax.nn.sigmoid(gates[:, 0 * H:1 * H])
            f_g = jax.nn.sigmoid(gates[:, 1 * H:2 * H])
            g_g = jnp.tanh(gates[:, 2 * H:3 * H])
            o_g = jax.nn.sigmoid(gates[:, 3 * H:4 * H])
            cl = f_g * c[l] + i_g * g_g
            hl = o_g * jnp.tanh(cl)
            new_h.append(hl)
            new_c.append(cl)
            x = hl
        h = jnp.stack(new_h)
        c = jnp.stack(new_c)
        outs.append(x @ params["wfc"].T + params["bfc"])
    return jnp.stack(outs, axis=1)                                    # (B, T, V)


# ----------------------------------- main ------------------------------------
if __name__ == "__main__":
    key = jax.random.PRNGKey(0)
    k_par, k_feat, k_cap = jax.random.split(key, 3)

    params = init_params(k_par)
    features = jax.random.normal(k_feat, (BATCH, EMBED_SIZE), jnp.float32)
    captions = jax.random.randint(k_cap, (BATCH, CAP_LEN), 0, VOCAB_SIZE, jnp.int32)

    logits = decoder_rnn_forward(features, captions, params)
    logits = jax.block_until_ready(logits)

    ref = decoder_rnn_reference(features, captions, params)
    assert logits.shape == (BATCH, SEQ_T, VOCAB_SIZE), logits.shape
    assert jnp.allclose(logits, ref, atol=2e-5, rtol=2e-5), \
        float(jnp.max(jnp.abs(logits - ref)))

    print("KERNEL_OK")
</pallas_src>

<mosaic_0001>
module attributes {stable_mosaic.version = 11 : i64} {
  func.func @_decoder_lstm_fc_kernel(%arg0: memref<18x32xf32, #tpu.memory_space<vmem>>, %arg1: memref<32x128xf32, #tpu.memory_space<vmem>>, %arg2: memref<1x128xf32, #tpu.memory_space<vmem>>, %arg3: memref<1x128xf32, #tpu.memory_space<vmem>>, %arg4: memref<32x256xf32, #tpu.memory_space<vmem>>, %arg5: memref<32x256xf32, #tpu.memory_space<vmem>>, %arg6: memref<1x128xf32, #tpu.memory_space<vmem>>, %arg7: memref<18x128xf32, #tpu.memory_space<vmem>>) attributes {dimension_semantics = [], scalar_prefetch = 0 : i64, scratch_operands = 0 : i64, tpu.core_type = #tpu.core_type<tc>} {
    %c0 = arith.constant 0 : index
    %c0_0 = arith.constant 0 : index
    %0 = vector.load %arg0[%c0, %c0_0] : memref<18x32xf32, #tpu.memory_space<vmem>>, vector<18x32xf32>
    %c0_1 = arith.constant 0 : index
    %c0_2 = arith.constant 0 : index
    %1 = vector.load %arg1[%c0_1, %c0_2] : memref<32x128xf32, #tpu.memory_space<vmem>>, vector<32x128xf32>
    %cst = arith.constant dense<0.000000e+00> : vector<18x128xf32>
    %2 = tpu.matmul %0, %1, %cst {dimension_numbers = #tpu.dot_dimension_numbers<[1], [0], [0], [1], [0, 0, 1, 1], [], []>} : vector<18x32xf32>, vector<32x128xf32>, vector<18x128xf32> -> vector<18x128xf32>
    %c0_3 = arith.constant 0 : index
    %c0_4 = arith.constant 0 : index
    %3 = vector.load %arg2[%c0_3, %c0_4] : memref<1x128xf32, #tpu.memory_space<vmem>>, vector<1x128xf32>
    %4 = vector.broadcast %3 : vector<1x128xf32> to vector<18x128xf32>
    %5 = arith.addf %2, %4 : vector<18x128xf32>
    %c0_5 = arith.constant 0 : index
    %c0_6 = arith.constant 0 : index
    %6 = vector.load %arg4[%c0_5, %c0_6] : memref<32x256xf32, #tpu.memory_space<vmem>>, vector<32x256xf32>
    %c0_7 = arith.constant 0 : index
    %c0_8 = arith.constant 0 : index
    %7 = vector.load %arg5[%c0_7, %c0_8] : memref<32x256xf32, #tpu.memory_space<vmem>>, vector<32x256xf32>
    %c0_9 = arith.constant 0 : index
    %c0_10 = arith.constant 0 : index
    %8 = vector.load %arg6[%c0_9, %c0_10] : memref<1x128xf32, #tpu.memory_space<vmem>>, vector<1x128xf32>
    %9 = vector.shape_cast %8 : vector<1x128xf32> to vector<1x128xf32>
    %10 = vector.broadcast %9 : vector<1x128xf32> to vector<2x128xf32>
    %cst_11 = arith.constant 0.000000e+00 : f32
    %11 = vector.broadcast %cst_11 : f32 to vector<2x32xf32>
    %cst_12 = arith.constant 0.000000e+00 : f32
    %12 = vector.broadcast %cst_12 : f32 to vector<2x32xf32>
    %cst_13 = arith.constant 0.000000e+00 : f32
    %13 = vector.broadcast %cst_13 : f32 to vector<2x128xf32>
    %cst_14 = arith.constant 0.000000e+00 : f32
    %14 = vector.broadcast %cst_14 : f32 to vector<2x128xf32>
    %15 = vector.extract_strided_slice %5 {offsets = [0, 0], sizes = [2, 128], strides = [1, 1]} : vector<18x128xf32> to vector<2x128xf32>
    %16 = arith.addf %15, %13 : vector<2x128xf32>
    %17 = arith.negf %16 : vector<2x128xf32>
    %18 = math.exp %17 : vector<2x128xf32>
    %cst_15 = arith.constant 1.000000e+00 : f32
    %19 = vector.broadcast %cst_15 : f32 to vector<2x128xf32>
    %20 = arith.addf %19, %18 : vector<2x128xf32>
    %21 = arith.divf %19, %20 : vector<2x128xf32>
    %22 = math.tanh %16 : vector<2x128xf32>
    %23 = vector.extract_strided_slice %21 {offsets = [0, 0], sizes = [2, 32], strides = [1, 1]} : vector<2x128xf32> to vector<2x32xf32>
    %24 = vector.extract_strided_slice %21 {offsets = [0, 32], sizes = [2, 32], strides = [1, 1]} : vector<2x128xf32> to vector<2x32xf32>
    %25 = vector.extract_strided_slice %22 {offsets = [0, 64], sizes = [2, 32], strides = [1, 1]} : vector<2x128xf32> to vector<2x32xf32>
    %26 = vector.extract_strided_slice %21 {offsets = [0, 96], sizes = [2, 32], strides = [1, 1]} : vector<2x128xf32> to vector<2x32xf32>
    %27 = arith.mulf %24, %11 : vector<2x32xf32>
    %28 = arith.mulf %23, %25 : vector<2x32xf32>
    %29 = arith.addf %27, %28 : vector<2x32xf32>
    %30 = math.tanh %29 : vector<2x32xf32>
    %31 = arith.mulf %26, %30 : vector<2x32xf32>
    %cst_16 = arith.constant dense<0.000000e+00> : vector<2x256xf32>
    %32 = tpu.matmul %31, %6, %cst_16 {dimension_numbers = #tpu.dot_dimension_numbers<[1], [0], [0], [1], [0, 0, 1, 1], [], []>} : vector<2x32xf32>, vector<32x256xf32>, vector<2x256xf32> -> vector<2x256xf32>
    %33 = vector.extract_strided_slice %32 {offsets = [0, 0], sizes = [2, 128], strides = [1, 1]} : vector<2x256xf32> to vector<2x128xf32>
    %34 = vector.extract_strided_slice %32 {offsets = [0, 128], sizes = [2, 128], strides = [1, 1]} : vector<2x256xf32> to vector<2x128xf32>
    %35 = arith.addf %34, %14 : vector<2x128xf32>
    %36 = arith.addf %35, %10 : vector<2x128xf32>
    %37 = arith.negf %36 : vector<2x128xf32>
    %38 = math.exp %37 : vector<2x128xf32>
    %cst_17 = arith.constant 1.000000e+00 : f32
    %39 = vector.broadcast %cst_17 : f32 to vector<2x128xf32>
    %40 = arith.addf %39, %38 : vector<2x128xf32>
    %41 = arith.divf %39, %40 : vector<2x128xf32>
    %42 = math.tanh %36 : vector<2x128xf32>
    %43 = vector.extract_strided_slice %41 {offsets = [0, 0], sizes = [2, 32], strides = [1, 1]} : vector<2x128xf32> to vector<2x32xf32>
    %44 = vector.extract_strided_slice %41 {offsets = [0, 32], sizes = [2, 32], strides = [1, 1]} : vector<2x128xf32> to vector<2x32xf32>
    %45 = vector.extract_strided_slice %42 {offsets = [0, 64], sizes = [2, 32], strides = [1, 1]} : vector<2x128xf32> to vector<2x32xf32>
    %46 = vector.extract_strided_slice %41 {offsets = [0, 96], sizes = [2, 32], strides = [1, 1]} : vector<2x128xf32> to vector<2x32xf32>
    %47 = arith.mulf %44, %12 : vector<2x32xf32>
    %48 = arith.mulf %43, %45 : vector<2x32xf32>
    %49 = arith.addf %47, %48 : vector<2x32xf32>
    %50 = math.tanh %49 : vector<2x32xf32>
    %51 = arith.mulf %46, %50 : vector<2x32xf32>
    %cst_18 = arith.constant dense<0.000000e+00> : vector<2x256xf32>
    %52 = tpu.matmul %51, %7, %cst_18 {dimension_numbers = #tpu.dot_dimension_numbers<[1], [0], [0], [1], [0, 0, 1, 1], [], []>} : vector<2x32xf32>, vector<32x256xf32>, vector<2x256xf32> -> vector<2x256xf32>
    %53 = vector.extract_strided_slice %52 {offsets = [0, 0], sizes = [2, 128], strides = [1, 1]} : vector<2x256xf32> to vector<2x128xf32>
    %54 = vector.extract_strided_slice %52 {offsets = [0, 128], sizes = [2, 128], strides = [1, 1]} : vector<2x256xf32> to vector<2x128xf32>
    %55 = vector.extract_strided_slice %5 {offsets = [2, 0], sizes = [2, 128], strides = [1, 1]} : vector<18x128xf32> to vector<2x128xf32>
    %56 = arith.addf %55, %33 : vector<2x128xf32>
    %57 = arith.negf %56 : vector<2x128xf32>
    %58 = math.exp %57 : vector<2x128xf32>
    %cst_19 = arith.constant 1.000000e+00 : f32
    %59 = vector.broadcast %cst_19 : f32 to vector<2x128xf32>
    %60 = arith.addf %59, %58 : vector<2x128xf32>
    %61 = arith.divf %59, %60 : vector<2x128xf32>
    %62 = math.tanh %56 : vector<2x128xf32>
    %63 = vector.extract_strided_slice %61 {offsets = [0, 0], sizes = [2, 32], strides = [1, 1]} : vector<2x128xf32> to vector<2x32xf32>
    %64 = vector.extract_strided_slice %61 {offsets = [0, 32], sizes = [2, 32], strides = [1, 1]} : vector<2x128xf32> to vector<2x32xf32>
    %65 = vector.extract_strided_slice %62 {offsets = [0, 64], sizes = [2, 32], strides = [1, 1]} : vector<2x128xf32> to vector<2x32xf32>
    %66 = vector.extract_strided_slice %61 {offsets = [0, 96], sizes = [2, 32], strides = [1, 1]} : vector<2x128xf32> to vector<2x32xf32>
    %67 = arith.mulf %64, %29 : vector<2x32xf32>
    %68 = arith.mulf %63, %65 : vector<2x32xf32>
    %69 = arith.addf %67, %68 : vector<2x32xf32>
    %70 = math.tanh %69 : vector<2x32xf32>
    %71 = arith.mulf %66, %70 : vector<2x32xf32>
    %cst_20 = arith.constant dense<0.000000e+00> : vector<2x256xf32>
    %72 = tpu.matmul %71, %6, %cst_20 {dimension_numbers = #tpu.dot_dimension_numbers<[1], [0], [0], [1], [0, 0, 1, 1], [], []>} : vector<2x32xf32>, vector<32x256xf32>, vector<2x256xf32> -> vector<2x256xf32>
    %73 = vector.extract_strided_slice %72 {offsets = [0, 0], sizes = [2, 128], strides = [1, 1]} : vector<2x256xf32> to vector<2x128xf32>
    %74 = vector.extract_strided_slice %72 {offsets = [0, 128], sizes = [2, 128], strides = [1, 1]} : vector<2x256xf32> to vector<2x128xf32>
    %75 = arith.addf %74, %53 : vector<2x128xf32>
    %76 = arith.addf %75, %10 : vector<2x128xf32>
    %77 = arith.negf %76 : vector<2x128xf32>
    %78 = math.exp %77 : vector<2x128xf32>
    %cst_21 = arith.constant 1.000000e+00 : f32
    %79 = vector.broadcast %cst_21 : f32 to vector<2x128xf32>
    %80 = arith.addf %79, %78 : vector<2x128xf32>
    %81 = arith.divf %79, %80 : vector<2x128xf32>
    %82 = math.tanh %76 : vector<2x128xf32>
    %83 = vector.extract_strided_slice %81 {offsets = [0, 0], sizes = [2, 32], strides = [1, 1]} : vector<2x128xf32> to vector<2x32xf32>
    %84 = vector.extract_strided_slice %81 {offsets = [0, 32], sizes = [2, 32], strides = [1, 1]} : vector<2x128xf32> to vector<2x32xf32>
    %85 = vector.extract_strided_slice %82 {offsets = [0, 64], sizes = [2, 32], strides = [1, 1]} : vector<2x128xf32> to vector<2x32xf32>
    %86 = vector.extract_strided_slice %81 {offsets = [0, 96], sizes = [2, 32], strides = [1, 1]} : vector<2x128xf32> to vector<2x32xf32>
    %87 = arith.mulf %84, %49 : vector<2x32xf32>
    %88 = arith.mulf %83, %85 : vector<2x32xf32>
    %89 = arith.addf %87, %88 : vector<2x32xf32>
    %90 = math.tanh %89 : vector<2x32xf32>
    %91 = arith.mulf %86, %90 : vector<2x32xf32>
    %cst_22 = arith.constant dense<0.000000e+00> : vector<2x256xf32>
    %92 = tpu.matmul %91, %7, %cst_22 {dimension_numbers = #tpu.dot_dimension_numbers<[1], [0], [0], [1], [0, 0, 1, 1], [], []>} : vector<2x32xf32>, vector<32x256xf32>, vector<2x256xf32> -> vector<2x256xf32>
    %93 = vector.extract_strided_slice %92 {offsets = [0, 0], sizes = [2, 128], strides = [1, 1]} : vector<2x256xf32> to vector<2x128xf32>
    %94 = vector.extract_strided_slice %92 {offsets = [0, 128], sizes = [2, 128], strides = [1, 1]} : vector<2x256xf32> to vector<2x128xf32>
    %95 = vector.extract_strided_slice %5 {offsets = [4, 0], sizes = [2, 128], strides = [1, 1]} : vector<18x128xf32> to vector<2x128xf32>
    %96 = arith.addf %95, %73 : vector<2x128xf32>
    %97 = arith.negf %96 : vector<2x128xf32>
    %98 = math.exp %97 : vector<2x128xf32>
    %cst_23 = arith.constant 1.000000e+00 : f32
    %99 = vector.broadcast %cst_23 : f32 to vector<2x128xf32>
    %100 = arith.addf %99, %98 : vector<2x128xf32>
    %101 = arith.divf %99, %100 : vector<2x128xf32>
    %102 = math.tanh %96 : vector<2x128xf32>
    %103 = vector.extract_strided_slice %101 {offsets = [0, 0], sizes = [2, 32], strides = [1, 1]} : vector<2x128xf32> to vector<2x32xf32>
    %104 = vector.extract_strided_slice %101 {offsets = [0, 32], sizes = [2, 32], strides = [1, 1]} : vector<2x128xf32> to vector<2x32xf32>
    %105 = vector.extract_strided_slice %102 {offsets = [0, 64], sizes = [2, 32], strides = [1, 1]} : vector<2x128xf32> to vector<2x32xf32>
    %106 = vector.extract_strided_slice %101 {offsets = [0, 96], sizes = [2, 32], strides = [1, 1]} : vector<2x128xf32> to vector<2x32xf32>
    %107 = arith.mulf %104, %69 : vector<2x32xf32>
    %108 = arith.mulf %103, %105 : vector<2x32xf32>
    %109 = arith.addf %107, %108 : vector<2x32xf32>
    %110 = math.tanh %109 : vector<2x32xf32>
    %111 = arith.mulf %106, %110 : vector<2x32xf32>
    %cst_24 = arith.constant dense<0.000000e+00> : vector<2x256xf32>
    %112 = tpu.matmul %111, %6, %cst_24 {dimension_numbers = #tpu.dot_dimension_numbers<[1], [0], [0], [1], [0, 0, 1, 1], [], []>} : vector<2x32xf32>, vector<32x256xf32>, vector<2x256xf32> -> vector<2x256xf32>
    %113 = vector.extract_strided_slice %112 {offsets = [0, 0], sizes = [2, 128], strides = [1, 1]} : vector<2x256xf32> to vector<2x128xf32>
    %114 = vector.extract_strided_slice %112 {offsets = [0, 128], sizes = [2, 128], strides = [1, 1]} : vector<2x256xf32> to vector<2x128xf32>
    %115 = arith.addf %114, %93 : vector<2x128xf32>
    %116 = arith.addf %115, %10 : vector<2x128xf32>
    %117 = arith.negf %116 : vector<2x128xf32>
    %118 = math.exp %117 : vector<2x128xf32>
    %cst_25 = arith.constant 1.000000e+00 : f32
    %119 = vector.broadcast %cst_25 : f32 to vector<2x128xf32>
    %120 = arith.addf %119, %118 : vector<2x128xf32>
    %121 = arith.divf %119, %120 : vector<2x128xf32>
    %122 = math.tanh %116 : vector<2x128xf32>
    %123 = vector.extract_strided_slice %121 {offsets = [0, 0], sizes = [2, 32], strides = [1, 1]} : vector<2x128xf32> to vector<2x32xf32>
    %124 = vector.extract_strided_slice %121 {offsets = [0, 32], sizes = [2, 32], strides = [1, 1]} : vector<2x128xf32> to vector<2x32xf32>
    %125 = vector.extract_strided_slice %122 {offsets = [0, 64], sizes = [2, 32], strides = [1, 1]} : vector<2x128xf32> to vector<2x32xf32>
    %126 = vector.extract_strided_slice %121 {offsets = [0, 96], sizes = [2, 32], strides = [1, 1]} : vector<2x128xf32> to vector<2x32xf32>
    %127 = arith.mulf %124, %89 : vector<2x32xf32>
    %128 = arith.mulf %123, %125 : vector<2x32xf32>
    %129 = arith.addf %127, %128 : vector<2x32xf32>
    %130 = math.tanh %129 : vector<2x32xf32>
    %131 = arith.mulf %126, %130 : vector<2x32xf32>
    %cst_26 = arith.constant dense<0.000000e+00> : vector<2x256xf32>
    %132 = tpu.matmul %131, %7, %cst_26 {dimension_numbers = #tpu.dot_dimension_numbers<[1], [0], [0], [1], [0, 0, 1, 1], [], []>} : vector<2x32xf32>, vector<32x256xf32>, vector<2x256xf32> -> vector<2x256xf32>
    %133 = vector.extract_strided_slice %132 {offsets = [0, 0], sizes = [2, 128], strides = [1, 1]} : vector<2x256xf32> to vector<2x128xf32>
    %134 = vector.extract_strided_slice %132 {offsets = [0, 128], sizes = [2, 128], strides = [1, 1]} : vector<2x256xf32> to vector<2x128xf32>
    %135 = vector.extract_strided_slice %5 {offsets = [6, 0], sizes = [2, 128], strides = [1, 1]} : vector<18x128xf32> to vector<2x128xf32>
    %136 = arith.addf %135, %113 : vector<2x128xf32>
    %137 = arith.negf %136 : vector<2x128xf32>
    %138 = math.exp %137 : vector<2x128xf32>
    %cst_27 = arith.constant 1.000000e+00 : f32
    %139 = vector.broadcast %cst_27 : f32 to vector<2x128xf32>
    %140 = arith.addf %139, %138 : vector<2x128xf32>
    %141 = arith.divf %139, %140 : vector<2x128xf32>
    %142 = math.tanh %136 : vector<2x128xf32>
    %143 = vector.extract_strided_slice %141 {offsets = [0, 0], sizes = [2, 32], strides = [1, 1]} : vector<2x128xf32> to vector<2x32xf32>
    %144 = vector.extract_strided_slice %141 {offsets = [0, 32], sizes = [2, 32], strides = [1, 1]} : vector<2x128xf32> to vector<2x32xf32>
    %145 = vector.extract_strided_slice %142 {offsets = [0, 64], sizes = [2, 32], strides = [1, 1]} : vector<2x128xf32> to vector<2x32xf32>
    %146 = vector.extract_strided_slice %141 {offsets = [0, 96], sizes = [2, 32], strides = [1, 1]} : vector<2x128xf32> to vector<2x32xf32>
    %147 = arith.mulf %144, %109 : vector<2x32xf32>
    %148 = arith.mulf %143, %145 : vector<2x32xf32>
    %149 = arith.addf %147, %148 : vector<2x32xf32>
    %150 = math.tanh %149 : vector<2x32xf32>
    %151 = arith.mulf %146, %150 : vector<2x32xf32>
    %cst_28 = arith.constant dense<0.000000e+00> : vector<2x256xf32>
    %152 = tpu.matmul %151, %6, %cst_28 {dimension_numbers = #tpu.dot_dimension_numbers<[1], [0], [0], [1], [0, 0, 1, 1], [], []>} : vector<2x32xf32>, vector<32x256xf32>, vector<2x256xf32> -> vector<2x256xf32>
    %153 = vector.extract_strided_slice %152 {offsets = [0, 0], sizes = [2, 128], strides = [1, 1]} : vector<2x256xf32> to vector<2x128xf32>
    %154 = vector.extract_strided_slice %152 {offsets = [0, 128], sizes = [2, 128], strides = [1, 1]} : vector<2x256xf32> to vector<2x128xf32>
    %155 = arith.addf %154, %133 : vector<2x128xf32>
    %156 = arith.addf %155, %10 : vector<2x128xf32>
    %157 = arith.negf %156 : vector<2x128xf32>
    %158 = math.exp %157 : vector<2x128xf32>
    %cst_29 = arith.constant 1.000000e+00 : f32
    %159 = vector.broadcast %cst_29 : f32 to vector<2x128xf32>
    %160 = arith.addf %159, %158 : vector<2x128xf32>
    %161 = arith.divf %159, %160 : vector<2x128xf32>
    %162 = math.tanh %156 : vector<2x128xf32>
    %163 = vector.extract_strided_slice %161 {offsets = [0, 0], sizes = [2, 32], strides = [1, 1]} : vector<2x128xf32> to vector<2x32xf32>
    %164 = vector.extract_strided_slice %161 {offsets = [0, 32], sizes = [2, 32], strides = [1, 1]} : vector<2x128xf32> to vector<2x32xf32>
    %165 = vector.extract_strided_slice %162 {offsets = [0, 64], sizes = [2, 32], strides = [1, 1]} : vector<2x128xf32> to vector<2x32xf32>
    %166 = vector.extract_strided_slice %161 {offsets = [0, 96], sizes = [2, 32], strides = [1, 1]} : vector<2x128xf32> to vector<2x32xf32>
    %167 = arith.mulf %164, %129 : vector<2x32xf32>
    %168 = arith.mulf %163, %165 : vector<2x32xf32>
    %169 = arith.addf %167, %168 : vector<2x32xf32>
    %170 = math.tanh %169 : vector<2x32xf32>
    %171 = arith.mulf %166, %170 : vector<2x32xf32>
    %cst_30 = arith.constant dense<0.000000e+00> : vector<2x256xf32>
    %172 = tpu.matmul %171, %7, %cst_30 {dimension_numbers = #tpu.dot_dimension_numbers<[1], [0], [0], [1], [0, 0, 1, 1], [], []>} : vector<2x32xf32>, vector<32x256xf32>, vector<2x256xf32> -> vector<2x256xf32>
    %173 = vector.extract_strided_slice %172 {offsets = [0, 0], sizes = [2, 128], strides = [1, 1]} : vector<2x256xf32> to vector<2x128xf32>
    %174 = vector.extract_strided_slice %172 {offsets = [0, 128], sizes = [2, 128], strides = [1, 1]} : vector<2x256xf32> to vector<2x128xf32>
    %175 = vector.extract_strided_slice %5 {offsets = [8, 0], sizes = [2, 128], strides = [1, 1]} : vector<18x128xf32> to vector<2x128xf32>
    %176 = arith.addf %175, %153 : vector<2x128xf32>
    %177 = arith.negf %176 : vector<2x128xf32>
    %178 = math.exp %177 : vector<2x128xf32>
    %cst_31 = arith.constant 1.000000e+00 : f32
    %179 = vector.broadcast %cst_31 : f32 to vector<2x128xf32>
    %180 = arith.addf %179, %178 : vector<2x128xf32>
    %181 = arith.divf %179, %180 : vector<2x128xf32>
    %182 = math.tanh %176 : vector<2x128xf32>
    %183 = vector.extract_strided_slice %181 {offsets = [0, 0], sizes = [2, 32], strides = [1, 1]} : vector<2x128xf32> to vector<2x32xf32>
    %184 = vector.extract_strided_slice %181 {offsets = [0, 32], sizes = [2, 32], strides = [1, 1]} : vector<2x128xf32> to vector<2x32xf32>
    %185 = vector.extract_strided_slice %182 {offsets = [0, 64], sizes = [2, 32], strides = [1, 1]} : vector<2x128xf32> to vector<2x32xf32>
    %186 = vector.extract_strided_slice %181 {offsets = [0, 96], sizes = [2, 32], strides = [1, 1]} : vector<2x128xf32> to vector<2x32xf32>
    %187 = arith.mulf %184, %149 : vector<2x32xf32>
    %188 = arith.mulf %183, %185 : vector<2x32xf32>
    %189 = arith.addf %187, %188 : vector<2x32xf32>
    %190 = math.tanh %189 : vector<2x32xf32>
    %191 = arith.mulf %186, %190 : vector<2x32xf32>
    %cst_32 = arith.constant dense<0.000000e+00> : vector<2x256xf32>
    %192 = tpu.matmul %191, %6, %cst_32 {dimension_numbers = #tpu.dot_dimension_numbers<[1], [0], [0], [1], [0, 0, 1, 1], [], []>} : vector<2x32xf32>, vector<32x256xf32>, vector<2x256xf32> -> vector<2x256xf32>
    %193 = vector.extract_strided_slice %192 {offsets = [0, 0], sizes = [2, 128], strides = [1, 1]} : vector<2x256xf32> to vector<2x128xf32>
    %194 = vector.extract_strided_slice %192 {offsets = [0, 128], sizes = [2, 128], strides = [1, 1]} : vector<2x256xf32> to vector<2x128xf32>
    %195 = arith.addf %194, %173 : vector<2x128xf32>
    %196 = arith.addf %195, %10 : vector<2x128xf32>
    %197 = arith.negf %196 : vector<2x128xf32>
    %198 = math.exp %197 : vector<2x128xf32>
    %cst_33 = arith.constant 1.000000e+00 : f32
    %199 = vector.broadcast %cst_33 : f32 to vector<2x128xf32>
    %200 = arith.addf %199, %198 : vector<2x128xf32>
    %201 = arith.divf %199, %200 : vector<2x128xf32>
    %202 = math.tanh %196 : vector<2x128xf32>
    %203 = vector.extract_strided_slice %201 {offsets = [0, 0], sizes = [2, 32], strides = [1, 1]} : vector<2x128xf32> to vector<2x32xf32>
    %204 = vector.extract_strided_slice %201 {offsets = [0, 32], sizes = [2, 32], strides = [1, 1]} : vector<2x128xf32> to vector<2x32xf32>
    %205 = vector.extract_strided_slice %202 {offsets = [0, 64], sizes = [2, 32], strides = [1, 1]} : vector<2x128xf32> to vector<2x32xf32>
    %206 = vector.extract_strided_slice %201 {offsets = [0, 96], sizes = [2, 32], strides = [1, 1]} : vector<2x128xf32> to vector<2x32xf32>
    %207 = arith.mulf %204, %169 : vector<2x32xf32>
    %208 = arith.mulf %203, %205 : vector<2x32xf32>
    %209 = arith.addf %207, %208 : vector<2x32xf32>
    %210 = math.tanh %209 : vector<2x32xf32>
    %211 = arith.mulf %206, %210 : vector<2x32xf32>
    %cst_34 = arith.constant dense<0.000000e+00> : vector<2x256xf32>
    %212 = tpu.matmul %211, %7, %cst_34 {dimension_numbers = #tpu.dot_dimension_numbers<[1], [0], [0], [1], [0, 0, 1, 1], [], []>} : vector<2x32xf32>, vector<32x256xf32>, vector<2x256xf32> -> vector<2x256xf32>
    %213 = vector.extract_strided_slice %212 {offsets = [0, 0], sizes = [2, 128], strides = [1, 1]} : vector<2x256xf32> to vector<2x128xf32>
    %214 = vector.extract_strided_slice %212 {offsets = [0, 128], sizes = [2, 128], strides = [1, 1]} : vector<2x256xf32> to vector<2x128xf32>
    %215 = vector.extract_strided_slice %5 {offsets = [10, 0], sizes = [2, 128], strides = [1, 1]} : vector<18x128xf32> to vector<2x128xf32>
    %216 = arith.addf %215, %193 : vector<2x128xf32>
    %217 = arith.negf %216 : vector<2x128xf32>
    %218 = math.exp %217 : vector<2x128xf32>
    %cst_35 = arith.constant 1.000000e+00 : f32
    %219 = vector.broadcast %cst_35 : f32 to vector<2x128xf32>
    %220 = arith.addf %219, %218 : vector<2x128xf32>
    %221 = arith.divf %219, %220 : vector<2x128xf32>
    %222 = math.tanh %216 : vector<2x128xf32>
    %223 = vector.extract_strided_slice %221 {offsets = [0, 0], sizes = [2, 32], strides = [1, 1]} : vector<2x128xf32> to vector<2x32xf32>
    %224 = vector.extract_strided_slice %221 {offsets = [0, 32], sizes = [2, 32], strides = [1, 1]} : vector<2x128xf32> to vector<2x32xf32>
    %225 = vector.extract_strided_slice %222 {offsets = [0, 64], sizes = [2, 32], strides = [1, 1]} : vector<2x128xf32> to vector<2x32xf32>
    %226 = vector.extract_strided_slice %221 {offsets = [0, 96], sizes = [2, 32], strides = [1, 1]} : vector<2x128xf32> to vector<2x32xf32>
    %227 = arith.mulf %224, %189 : vector<2x32xf32>
    %228 = arith.mulf %223, %225 : vector<2x32xf32>
    %229 = arith.addf %227, %228 : vector<2x32xf32>
    %230 = math.tanh %229 : vector<2x32xf32>
    %231 = arith.mulf %226, %230 : vector<2x32xf32>
    %cst_36 = arith.constant dense<0.000000e+00> : vector<2x256xf32>
    %232 = tpu.matmul %231, %6, %cst_36 {dimension_numbers = #tpu.dot_dimension_numbers<[1], [0], [0], [1], [0, 0, 1, 1], [], []>} : vector<2x32xf32>, vector<32x256xf32>, vector<2x256xf32> -> vector<2x256xf32>
    %233 = vector.extract_strided_slice %232 {offsets = [0, 0], sizes = [2, 128], strides = [1, 1]} : vector<2x256xf32> to vector<2x128xf32>
    %234 = vector.extract_strided_slice %232 {offsets = [0, 128], sizes = [2, 128], strides = [1, 1]} : vector<2x256xf32> to vector<2x128xf32>
    %235 = arith.addf %234, %213 : vector<2x128xf32>
    %236 = arith.addf %235, %10 : vector<2x128xf32>
    %237 = arith.negf %236 : vector<2x128xf32>
    %238 = math.exp %237 : vector<2x128xf32>
    %cst_37 = arith.constant 1.000000e+00 : f32
    %239 = vector.broadcast %cst_37 : f32 to vector<2x128xf32>
    %240 = arith.addf %239, %238 : vector<2x128xf32>
    %241 = arith.divf %239, %240 : vector<2x128xf32>
    %242 = math.tanh %236 : vector<2x128xf32>
    %243 = vector.extract_strided_slice %241 {offsets = [0, 0], sizes = [2, 32], strides = [1, 1]} : vector<2x128xf32> to vector<2x32xf32>
    %244 = vector.extract_strided_slice %241 {offsets = [0, 32], sizes = [2, 32], strides = [1, 1]} : vector<2x128xf32> to vector<2x32xf32>
    %245 = vector.extract_strided_slice %242 {offsets = [0, 64], sizes = [2, 32], strides = [1, 1]} : vector<2x128xf32> to vector<2x32xf32>
    %246 = vector.extract_strided_slice %241 {offsets = [0, 96], sizes = [2, 32], strides = [1, 1]} : vector<2x128xf32> to vector<2x32xf32>
    %247 = arith.mulf %244, %209 : vector<2x32xf32>
    %248 = arith.mulf %243, %245 : vector<2x32xf32>
    %249 = arith.addf %247, %248 : vector<2x32xf32>
    %250 = math.tanh %249 : vector<2x32xf32>
    %251 = arith.mulf %246, %250 : vector<2x32xf32>
    %cst_38 = arith.constant dense<0.000000e+00> : vector<2x256xf32>
    %252 = tpu.matmul %251, %7, %cst_38 {dimension_numbers = #tpu.dot_dimension_numbers<[1], [0], [0], [1], [0, 0, 1, 1], [], []>} : vector<2x32xf32>, vector<32x256xf32>, vector<2x256xf32> -> vector<2x256xf32>
    %253 = vector.extract_strided_slice %252 {offsets = [0, 0], sizes = [2, 128], strides = [1, 1]} : vector<2x256xf32> to vector<2x128xf32>
    %254 = vector.extract_strided_slice %252 {offsets = [0, 128], sizes = [2, 128], strides = [1, 1]} : vector<2x256xf32> to vector<2x128xf32>
    %255 = vector.extract_strided_slice %5 {offsets = [12, 0], sizes = [2, 128], strides = [1, 1]} : vector<18x128xf32> to vector<2x128xf32>
    %256 = arith.addf %255, %233 : vector<2x128xf32>
    %257 = arith.negf %256 : vector<2x128xf32>
    %258 = math.exp %257 : vector<2x128xf32>
    %cst_39 = arith.constant 1.000000e+00 : f32
    %259 = vector.broadcast %cst_39 : f32 to vector<2x128xf32>
    %260 = arith.addf %259, %258 : vector<2x128xf32>
    %261 = arith.divf %259, %260 : vector<2x128xf32>
    %262 = math.tanh %256 : vector<2x128xf32>
    %263 = vector.extract_strided_slice %261 {offsets = [0, 0], sizes = [2, 32], strides = [1, 1]} : vector<2x128xf32> to vector<2x32xf32>
    %264 = vector.extract_strided_slice %261 {offsets = [0, 32], sizes = [2, 32], strides = [1, 1]} : vector<2x128xf32> to vector<2x32xf32>
    %265 = vector.extract_strided_slice %262 {offsets = [0, 64], sizes = [2, 32], strides = [1, 1]} : vector<2x128xf32> to vector<2x32xf32>
    %266 = vector.extract_strided_slice %261 {offsets = [0, 96], sizes = [2, 32], strides = [1, 1]} : vector<2x128xf32> to vector<2x32xf32>
    %267 = arith.mulf %264, %229 : vector<2x32xf32>
    %268 = arith.mulf %263, %265 : vector<2x32xf32>
    %269 = arith.addf %267, %268 : vector<2x32xf32>
    %270 = math.tanh %269 : vector<2x32xf32>
    %271 = arith.mulf %266, %270 : vector<2x32xf32>
    %cst_40 = arith.constant dense<0.000000e+00> : vector<2x256xf32>
    %272 = tpu.matmul %271, %6, %cst_40 {dimension_numbers = #tpu.dot_dimension_numbers<[1], [0], [0], [1], [0, 0, 1, 1], [], []>} : vector<2x32xf32>, vector<32x256xf32>, vector<2x256xf32> -> vector<2x256xf32>
    %273 = vector.extract_strided_slice %272 {offsets = [0, 0], sizes = [2, 128], strides = [1, 1]} : vector<2x256xf32> to vector<2x128xf32>
    %274 = vector.extract_strided_slice %272 {offsets = [0, 128], sizes = [2, 128], strides = [1, 1]} : vector<2x256xf32> to vector<2x128xf32>
    %275 = arith.addf %274, %253 : vector<2x128xf32>
    %276 = arith.addf %275, %10 : vector<2x128xf32>
    %277 = arith.negf %276 : vector<2x128xf32>
    %278 = math.exp %277 : vector<2x128xf32>
    %cst_41 = arith.constant 1.000000e+00 : f32
    %279 = vector.broadcast %cst_41 : f32 to vector<2x128xf32>
    %280 = arith.addf %279, %278 : vector<2x128xf32>
    %281 = arith.divf %279, %280 : vector<2x128xf32>
    %282 = math.tanh %276 : vector<2x128xf32>
    %283 = vector.extract_strided_slice %281 {offsets = [0, 0], sizes = [2, 32], strides = [1, 1]} : vector<2x128xf32> to vector<2x32xf32>
    %284 = vector.extract_strided_slice %281 {offsets = [0, 32], sizes = [2, 32], strides = [1, 1]} : vector<2x128xf32> to vector<2x32xf32>
    %285 = vector.extract_strided_slice %282 {offsets = [0, 64], sizes = [2, 32], strides = [1, 1]} : vector<2x128xf32> to vector<2x32xf32>
    %286 = vector.extract_strided_slice %281 {offsets = [0, 96], sizes = [2, 32], strides = [1, 1]} : vector<2x128xf32> to vector<2x32xf32>
    %287 = arith.mulf %284, %249 : vector<2x32xf32>
    %288 = arith.mulf %283, %285 : vector<2x32xf32>
    %289 = arith.addf %287, %288 : vector<2x32xf32>
    %290 = math.tanh %289 : vector<2x32xf32>
    %291 = arith.mulf %286, %290 : vector<2x32xf32>
    %cst_42 = arith.constant dense<0.000000e+00> : vector<2x256xf32>
    %292 = tpu.matmul %291, %7, %cst_42 {dimension_numbers = #tpu.dot_dimension_numbers<[1], [0], [0], [1], [0, 0, 1, 1], [], []>} : vector<2x32xf32>, vector<32x256xf32>, vector<2x256xf32> -> vector<2x256xf32>
    %293 = vector.extract_strided_slice %292 {offsets = [0, 0], sizes = [2, 128], strides = [1, 1]} : vector<2x256xf32> to vector<2x128xf32>
    %294 = vector.extract_strided_slice %292 {offsets = [0, 128], sizes = [2, 128], strides = [1, 1]} : vector<2x256xf32> to vector<2x128xf32>
    %295 = vector.extract_strided_slice %5 {offsets = [14, 0], sizes = [2, 128], strides = [1, 1]} : vector<18x128xf32> to vector<2x128xf32>
    %296 = arith.addf %295, %273 : vector<2x128xf32>
    %297 = arith.negf %296 : vector<2x128xf32>
    %298 = math.exp %297 : vector<2x128xf32>
    %cst_43 = arith.constant 1.000000e+00 : f32
    %299 = vector.broadcast %cst_43 : f32 to vector<2x128xf32>
    %300 = arith.addf %299, %298 : vector<2x128xf32>
    %301 = arith.divf %299, %300 : vector<2x128xf32>
    %302 = math.tanh %296 : vector<2x128xf32>
    %303 = vector.extract_strided_slice %301 {offsets = [0, 0], sizes = [2, 32], strides = [1, 1]} : vector<2x128xf32> to vector<2x32xf32>
    %304 = vector.extract_strided_slice %301 {offsets = [0, 32], sizes = [2, 32], strides = [1, 1]} : vector<2x128xf32> to vector<2x32xf32>
    %305 = vector.extract_strided_slice %302 {offsets = [0, 64], sizes = [2, 32], strides = [1, 1]} : vector<2x128xf32> to vector<2x32xf32>
    %306 = vector.extract_strided_slice %301 {offsets = [0, 96], sizes = [2, 32], strides = [1, 1]} : vector<2x128xf32> to vector<2x32xf32>
    %307 = arith.mulf %304, %269 : vector<2x32xf32>
    %308 = arith.mulf %303, %305 : vector<2x32xf32>
    %309 = arith.addf %307, %308 : vector<2x32xf32>
    %310 = math.tanh %309 : vector<2x32xf32>
    %311 = arith.mulf %306, %310 : vector<2x32xf32>
    %cst_44 = arith.constant dense<0.000000e+00> : vector<2x256xf32>
    %312 = tpu.matmul %311, %6, %cst_44 {dimension_numbers = #tpu.dot_dimension_numbers<[1], [0], [0], [1], [0, 0, 1, 1], [], []>} : vector<2x32xf32>, vector<32x256xf32>, vector<2x256xf32> -> vector<2x256xf32>
    %313 = vector.extract_strided_slice %312 {offsets = [0, 0], sizes = [2, 128], strides = [1, 1]} : vector<2x256xf32> to vector<2x128xf32>
    %314 = vector.extract_strided_slice %312 {offsets = [0, 128], sizes = [2, 128], strides = [1, 1]} : vector<2x256xf32> to vector<2x128xf32>
    %315 = arith.addf %314, %293 : vector<2x128xf32>
    %316 = arith.addf %315, %10 : vector<2x128xf32>
    %317 = arith.negf %316 : vector<2x128xf32>
    %318 = math.exp %317 : vector<2x128xf32>
    %cst_45 = arith.constant 1.000000e+00 : f32
    %319 = vector.broadcast %cst_45 : f32 to vector<2x128xf32>
    %320 = arith.addf %319, %318 : vector<2x128xf32>
    %321 = arith.divf %319, %320 : vector<2x128xf32>
    %322 = math.tanh %316 : vector<2x128xf32>
    %323 = vector.extract_strided_slice %321 {offsets = [0, 0], sizes = [2, 32], strides = [1, 1]} : vector<2x128xf32> to vector<2x32xf32>
    %324 = vector.extract_strided_slice %321 {offsets = [0, 32], sizes = [2, 32], strides = [1, 1]} : vector<2x128xf32> to vector<2x32xf32>
    %325 = vector.extract_strided_slice %322 {offsets = [0, 64], sizes = [2, 32], strides = [1, 1]} : vector<2x128xf32> to vector<2x32xf32>
    %326 = vector.extract_strided_slice %321 {offsets = [0, 96], sizes = [2, 32], strides = [1, 1]} : vector<2x128xf32> to vector<2x32xf32>
    %327 = arith.mulf %324, %289 : vector<2x32xf32>
    %328 = arith.mulf %323, %325 : vector<2x32xf32>
    %329 = arith.addf %327, %328 : vector<2x32xf32>
    %330 = math.tanh %329 : vector<2x32xf32>
    %331 = arith.mulf %326, %330 : vector<2x32xf32>
    %cst_46 = arith.constant dense<0.000000e+00> : vector<2x256xf32>
    %332 = tpu.matmul %331, %7, %cst_46 {dimension_numbers = #tpu.dot_dimension_numbers<[1], [0], [0], [1], [0, 0, 1, 1], [], []>} : vector<2x32xf32>, vector<32x256xf32>, vector<2x256xf32> -> vector<2x256xf32>
    %333 = vector.extract_strided_slice %332 {offsets = [0, 0], sizes = [2, 128], strides = [1, 1]} : vector<2x256xf32> to vector<2x128xf32>
    %334 = vector.extract_strided_slice %332 {offsets = [0, 128], sizes = [2, 128], strides = [1, 1]} : vector<2x256xf32> to vector<2x128xf32>
    %335 = vector.extract_strided_slice %5 {offsets = [16, 0], sizes = [2, 128], strides = [1, 1]} : vector<18x128xf32> to vector<2x128xf32>
    %336 = arith.addf %335, %313 : vector<2x128xf32>
    %337 = arith.negf %336 : vector<2x128xf32>
    %338 = math.exp %337 : vector<2x128xf32>
    %cst_47 = arith.constant 1.000000e+00 : f32
    %339 = vector.broadcast %cst_47 : f32 to vector<2x128xf32>
    %340 = arith.addf %339, %338 : vector<2x128xf32>
    %341 = arith.divf %339, %340 : vector<2x128xf32>
    %342 = math.tanh %336 : vector<2x128xf32>
    %343 = vector.extract_strided_slice %341 {offsets = [0, 0], sizes = [2, 32], strides = [1, 1]} : vector<2x128xf32> to vector<2x32xf32>
    %344 = vector.extract_strided_slice %341 {offsets = [0, 32], sizes = [2, 32], strides = [1, 1]} : vector<2x128xf32> to vector<2x32xf32>
    %345 = vector.extract_strided_slice %342 {offsets = [0, 64], sizes = [2, 32], strides = [1, 1]} : vector<2x128xf32> to vector<2x32xf32>
    %346 = vector.extract_strided_slice %341 {offsets = [0, 96], sizes = [2, 32], strides = [1, 1]} : vector<2x128xf32> to vector<2x32xf32>
    %347 = arith.mulf %344, %309 : vector<2x32xf32>
    %348 = arith.mulf %343, %345 : vector<2x32xf32>
    %349 = arith.addf %347, %348 : vector<2x32xf32>
    %350 = math.tanh %349 : vector<2x32xf32>
    %351 = arith.mulf %346, %350 : vector<2x32xf32>
    %cst_48 = arith.constant dense<0.000000e+00> : vector<2x256xf32>
    %352 = tpu.matmul %351, %6, %cst_48 {dimension_numbers = #tpu.dot_dimension_numbers<[1], [0], [0], [1], [0, 0, 1, 1], [], []>} : vector<2x32xf32>, vector<32x256xf32>, vector<2x256xf32> -> vector<2x256xf32>
    %353 = vector.extract_strided_slice %352 {offsets = [0, 128], sizes = [2, 128], strides = [1, 1]} : vector<2x256xf32> to vector<2x128xf32>
    %354 = arith.addf %353, %333 : vector<2x128xf32>
    %355 = arith.addf %354, %10 : vector<2x128xf32>
    %356 = arith.negf %355 : vector<2x128xf32>
    %357 = math.exp %356 : vector<2x128xf32>
    %cst_49 = arith.constant 1.000000e+00 : f32
    %358 = vector.broadcast %cst_49 : f32 to vector<2x128xf32>
    %359 = arith.addf %358, %357 : vector<2x128xf32>
    %360 = arith.divf %358, %359 : vector<2x128xf32>
    %361 = math.tanh %355 : vector<2x128xf32>
    %362 = vector.extract_strided_slice %360 {offsets = [0, 0], sizes = [2, 32], strides = [1, 1]} : vector<2x128xf32> to vector<2x32xf32>
    %363 = vector.extract_strided_slice %360 {offsets = [0, 32], sizes = [2, 32], strides = [1, 1]} : vector<2x128xf32> to vector<2x32xf32>
    %364 = vector.extract_strided_slice %361 {offsets = [0, 64], sizes = [2, 32], strides = [1, 1]} : vector<2x128xf32> to vector<2x32xf32>
    %365 = vector.extract_strided_slice %360 {offsets = [0, 96], sizes = [2, 32], strides = [1, 1]} : vector<2x128xf32> to vector<2x32xf32>
    %366 = arith.mulf %363, %329 : vector<2x32xf32>
    %367 = arith.mulf %362, %364 : vector<2x32xf32>
    %368 = arith.addf %366, %367 : vector<2x32xf32>
    %369 = math.tanh %368 : vector<2x32xf32>
    %370 = arith.mulf %365, %369 : vector<2x32xf32>
    %cst_50 = arith.constant dense<0.000000e+00> : vector<2x256xf32>
    %371 = tpu.matmul %370, %7, %cst_50 {dimension_numbers = #tpu.dot_dimension_numbers<[1], [0], [0], [1], [0, 0, 1, 1], [], []>} : vector<2x32xf32>, vector<32x256xf32>, vector<2x256xf32> -> vector<2x256xf32>
    %372 = vector.extract_strided_slice %371 {offsets = [0, 128], sizes = [2, 128], strides = [1, 1]} : vector<2x256xf32> to vector<2x128xf32>
    %373 = tpu.concatenate %54, %94, %134, %174, %214, %254, %294, %334, %372 in 0 : vector<2x128xf32>, vector<2x128xf32>, vector<2x128xf32>, vector<2x128xf32>, vector<2x128xf32>, vector<2x128xf32>, vector<2x128xf32>, vector<2x128xf32>, vector<2x128xf32> -> vector<18x128xf32>
    %c0_51 = arith.constant 0 : index
    %c0_52 = arith.constant 0 : index
    %374 = vector.load %arg3[%c0_51, %c0_52] : memref<1x128xf32, #tpu.memory_space<vmem>>, vector<1x128xf32>
    %375 = vector.broadcast %374 : vector<1x128xf32> to vector<18x128xf32>
    %376 = arith.addf %373, %375 : vector<18x128xf32>
    %c0_53 = arith.constant 0 : index
    %c0_54 = arith.constant 0 : index
    %377 = vector.load %arg7[%c0_53, %c0_54] : memref<18x128xf32, #tpu.memory_space<vmem>>, vector<18x128xf32>
    tpu.vector_store %arg7[%c0_53, %c0_54], %376 {strides = array<i32>} : memref<18x128xf32, #tpu.memory_space<vmem>>, vector<18x128xf32>,
    return
  }
}

</mosaic_0001>

<llo_original>
// kernel: tpu_custom_call.1
$region0: #{tpu_custom_call.1}
  #allocation0 [shape = 'u32[]', space=smem, size = 0x4, offset = 0x4, fixed_abs, tag = 'smem constant byte address 0x4 - core index']
  #allocation1 [shape = 'u32[72,128]{1,0:T(1,128)}', space=vmem, size = 0x9000, scoped, tag = 'internal scratch']
  %s0 = inlined_call_operand.hbm [shape: f32[18,32], index: 0, kind: input, shape index: {}]
  %s1 = inlined_call_operand.hbm [shape: f32[32,128], index: 1, kind: input, shape index: {}]
  %s2 = inlined_call_operand.vmem [shape: f32[1,128], index: 2, kind: input, shape index: {}]
  %s3 = inlined_call_operand.vmem [shape: f32[1,128], index: 3, kind: input, shape index: {}]
  %s4 = inlined_call_operand.hbm [shape: f32[32,256], index: 4, kind: input, shape index: {}]
  %s5 = inlined_call_operand.hbm [shape: f32[32,256], index: 5, kind: input, shape index: {}]
  %s6 = inlined_call_operand.vmem [shape: f32[1,128], index: 6, kind: input, shape index: {}]
  %s7 = inlined_call_operand.hbm [shape: f32[18,128], index: 7, kind: output, shape index: {}]
  %s8 = sld [smem:[#allocation0]]
  $region54: #{tpu_custom_call.1} parent=0
    _
  %s10 = ssub.s32 1, %s8
  %s11 = scalar_select 0, %s10, %s8
  $region1: #{tpu_custom_call.1} parent=0
    #allocation2 [shape = 'u8[12288]{0}', space=vmem, size = 0x3000, scoped, tag = 'input window, operand 0, single buffered']
    #allocation3 [shape = 's32[1]{0}', space=sflag, size = 0x4, scoped, tag = 'scoped memory for tpu_custom_call.1']
    #allocation4 [shape = 's32[1]{0}', space=sflag, size = 0x4, scoped, tag = 'scoped memory for tpu_custom_call.1']
    #allocation5 [shape = 'u8[16384]{0}', space=vmem, size = 0x4000, scoped, tag = 'input window, operand 1, single buffered']
    #allocation6 [shape = 's32[1]{0}', space=sflag, size = 0x4, scoped, tag = 'scoped memory for tpu_custom_call.1']
    #allocation7 [shape = 'u8[32768]{0}', space=vmem, size = 0x8000, scoped, tag = 'input window, operand 4, single buffered']
    #allocation8 [shape = 'u8[32768]{0}', space=vmem, size = 0x8000, scoped, tag = 'input window, operand 5, single buffered']
    #allocation9 [shape = 's32[1]{0}', space=sflag, size = 0x4, scoped, tag = 'scoped memory for tpu_custom_call.1']
    #allocation10 [shape = 'u8[12288]{0}', space=vmem, size = 0x3000, scoped, tag = 'output window, operand 0, single buffered']
    %12 = vsyncpa [#allocation3], 0
    %13 = vsyncpa [#allocation6], 0
    %14 = vsyncpa [#allocation9], 0
    %15 = vsyncpa [#allocation4], 0
    // Predicated region
    $region2: #{tpu_custom_call.1} parent=1 // pred_check
      _
    $region3: #{tpu_custom_call.1} parent=1 // pred_check_branch
      %17 = sbr.rel (0) target = $region5
    $region4: #{tpu_custom_call.1} parent=1 // pred_region
      %19 = vsyncadd [#allocation3], 0
      %s20 = sshll.u32 %s0, 4
      %s21 = int_to_ptr.hbm [resolvable:$true] %s20
      %s22 = sshll.u32 [#allocation2], 4
      %s23 = int_to_ptr.vmem [resolvable:$true] %s22
      %28 = dma.hbm_to_vmem [thread:$0]  %s21, 384, %s23, [#allocation3], 128, 128, 8
    $region5: #{tpu_custom_call.1} parent=1 // pred_fallthru
      _
    // Predicated region
    $region6: #{tpu_custom_call.1} parent=1 // pred_check
      _
    $region7: #{tpu_custom_call.1} parent=1 // pred_check_branch
      %30 = sbr.rel (0) target = $region9
    $region8: #{tpu_custom_call.1} parent=1 // pred_region
      %32 = vsyncadd [#allocation6], 0
      %s33 = sshll.u32 %s1, 4
      %s34 = int_to_ptr.hbm [resolvable:$true] %s33
      %s35 = sshll.u32 [#allocation5], 4
      %s36 = int_to_ptr.vmem [resolvable:$true] %s35
      %41 = dma.hbm_to_vmem [thread:$0]  %s34, 512, %s36, [#allocation6], 128, 128, 8
    $region9: #{tpu_custom_call.1} parent=1 // pred_fallthru
      _
    // Predicated region
    $region10: #{tpu_custom_call.1} parent=1 // pred_check
      _
    $region11: #{tpu_custom_call.1} parent=1 // pred_check_branch
      %43 = sbr.rel (0) target = $region13
    $region12: #{tpu_custom_call.1} parent=1 // pred_region
      _
    $region13: #{tpu_custom_call.1} parent=1 // pred_fallthru
      _
    // Predicated region
    $region14: #{tpu_custom_call.1} parent=1 // pred_check
      _
    $region15: #{tpu_custom_call.1} parent=1 // pred_check_branch
      %45 = sbr.rel (0) target = $region17
    $region16: #{tpu_custom_call.1} parent=1 // pred_region
      _
    $region17: #{tpu_custom_call.1} parent=1 // pred_fallthru
      _
    // Predicated region
    $region18: #{tpu_custom_call.1} parent=1 // pred_check
      _
    $region19: #{tpu_custom_call.1} parent=1 // pred_check_branch
      %47 = sbr.rel (0) target = $region21
    $region20: #{tpu_custom_call.1} parent=1 // pred_region
      %49 = vsyncadd [#allocation6], 0
      %s50 = sshll.u32 %s4, 4
      %s51 = int_to_ptr.hbm [resolvable:$true] %s50
      %s52 = sshll.u32 [#allocation7], 4
      %s53 = int_to_ptr.vmem [resolvable:$true] %s52
      %58 = dma.hbm_to_vmem [thread:$0]  %s51, 1024, %s53, [#allocation6], 256, 256, 16
    $region21: #{tpu_custom_call.1} parent=1 // pred_fallthru
      _
    // Predicated region
    $region22: #{tpu_custom_call.1} parent=1 // pred_check
      _
    $region23: #{tpu_custom_call.1} parent=1 // pred_check_branch
      %60 = sbr.rel (0) target = $region25
    $region24: #{tpu_custom_call.1} parent=1 // pred_region
      %62 = vsyncadd [#allocation9], 0
      %s63 = sshll.u32 %s5, 4
      %s64 = int_to_ptr.hbm [resolvable:$true] %s63
      %s65 = sshll.u32 [#allocation8], 4
      %s66 = int_to_ptr.vmem [resolvable:$true] %s65
      %71 = dma.hbm_to_vmem [thread:$0]  %s64, 1024, %s66, [#allocation9], 256, 256, 16
    $region25: #{tpu_custom_call.1} parent=1 // pred_fallthru
      _
    // Predicated region
    $region26: #{tpu_custom_call.1} parent=1 // pred_check
      _
    $region27: #{tpu_custom_call.1} parent=1 // pred_check_branch
      %73 = sbr.rel (0) target = $region29
    $region28: #{tpu_custom_call.1} parent=1 // pred_region
      _
    $region29: #{tpu_custom_call.1} parent=1 // pred_fallthru
      _
    // Predicated region
    $region30: #{tpu_custom_call.1} parent=1 // pred_check
      _
    $region31: #{tpu_custom_call.1} parent=1 // pred_check_branch
      %75 = sbr.rel (0) target = $region33
    $region32: #{tpu_custom_call.1} parent=1 // pred_region
      %77 = dma.done [#allocation3], 384
    $region33: #{tpu_custom_call.1} parent=1 // pred_fallthru
      _
    // Predicated region
    $region34: #{tpu_custom_call.1} parent=1 // pred_check
      _
    $region35: #{tpu_custom_call.1} parent=1 // pred_check_branch
      %79 = sbr.rel (0) target = $region37
    $region36: #{tpu_custom_call.1} parent=1 // pred_region
      %81 = dma.done [#allocation6], 512
    $region37: #{tpu_custom_call.1} parent=1 // pred_fallthru
      _
    // Predicated region
    $region38: #{tpu_custom_call.1} parent=1 // pred_check
      _
    $region39: #{tpu_custom_call.1} parent=1 // pred_check_branch
      %83 = sbr.rel (0) target = $region41
    $region40: #{tpu_custom_call.1} parent=1 // pred_region
      %85 = dma.done [#allocation6], 1024
    $region41: #{tpu_custom_call.1} parent=1 // pred_fallthru
      _
    // Predicated region
    $region42: #{tpu_custom_call.1} parent=1 // pred_check
      _
    $region43: #{tpu_custom_call.1} parent=1 // pred_check_branch
      %87 = sbr.rel (0) target = $region45
    $region44: #{tpu_custom_call.1} parent=1 // pred_region
      %89 = dma.done [#allocation9], 1024
    $region45: #{tpu_custom_call.1} parent=1 // pred_fallthru
      _
    %v90 = vld [vmem:[#allocation2] sm:$0xff]
    %v91 = vld [vmem:[#allocation2 + $0x8] sm:$0xff]
    %v92 = vld [vmem:[#allocation2 + $0x10] sm:$0x3]
    %v93 = vld [vmem:[#allocation5] sm:$0xff]
    %v94 = vld [vmem:[#allocation5 + $0x8] sm:$0xff]
    %v95 = vld [vmem:[#allocation5 + $0x10] sm:$0xff]
    %v96 = vld [vmem:[#allocation5 + $0x18] sm:$0xff]
    %v97 = vld [vmem:[%s2] sm:$0x1]
    %v99 = vperm.slane %v97, 0
    %vm101 = vcmask 261120
    %v103 = vsel %vm101, %v90, 0
    %v106 = vsel %vm101, %v91, 0
    %v109 = vsel %vm101, %v92, 0
    %111 = vmatpush.msra.mxu0 0.0
    %112 = vmatpush.msra.mxu0 0.0
    %113 = vmatpush.msra.mxu0 0.0
    %114 = vmatpush.msra.mxu0 0.0
    %115 = vmatpush.msra.mxu0 0.0
    %116 = vmatpush.msra.mxu0 0.0
    %117 = vmatpush.msra.mxu0 0.0
    %118 = vmatpush.msra.mxu0 0.0
    %119 = vmatpush.msra.mxu0 0.0
    %120 = vmatpush.msra.mxu0 0.0
    %121 = vmatpush.msra.mxu0 0.0
    %122 = vmatpush.msra.mxu0 0.0
    %123 = vmatpush.msra.mxu0 %v96
    %124 = vmatpush.msra.mxu0 %v95
    %125 = vmatpush.msra.mxu0 %v94
    %126 = vmatpush.msra.mxu0 %v93
    %127 = vmatmul.f32.gmra.mxu0 %v103
    %v128 = vpop.f32.mrf.mxu0
    %v129 = vadd.f32 %v99, %v128
    %130 = vmatmul.f32.gmra.mxu0 %v106
    %v131 = vpop.f32.mrf.mxu0
    %v132 = vadd.f32 %v99, %v131
    %133 = vmatmul.f32.gmra.mxu0 %v109
    %v134 = vpop.f32.mrf.mxu0
    %v135 = vadd.f32 %v99, %v134
    %136 = vdwg.mxu0
    %v137 = vld [vmem:[#allocation7] sm:$0xff]
    %v138 = vld [vmem:[#allocation7 + $0x8] sm:$0xff]
    %v139 = vld [vmem:[#allocation7 + $0x10] sm:$0xff]
    %v140 = vld [vmem:[#allocation7 + $0x18] sm:$0xff]
    %v141 = vld [vmem:[#allocation7 + $0x20] sm:$0xff]
    %v142 = vld [vmem:[#allocation7 + $0x28] sm:$0xff]
    %v143 = vld [vmem:[#allocation7 + $0x30] sm:$0xff]
    %v144 = vld [vmem:[#allocation7 + $0x38] sm:$0xff]
    %v145 = vld [vmem:[#allocation8] sm:$0xff]
    %v146 = vld [vmem:[#allocation8 + $0x8] sm:$0xff]
    %v147 = vld [vmem:[#allocation8 + $0x10] sm:$0xff]
    %v148 = vld [vmem:[#allocation8 + $0x18] sm:$0xff]
    %v149 = vld [vmem:[#allocation8 + $0x20] sm:$0xff]
    %v150 = vld [vmem:[#allocation8 + $0x28] sm:$0xff]
    %v151 = vld [vmem:[#allocation8 + $0x30] sm:$0xff]
    %v152 = vld [vmem:[#allocation8 + $0x38] sm:$0xff]
    %v153 = vld [vmem:[%s6] sm:$0x1]
    %v155 = vperm.slane %v153, 0
    %v157 = vadd.f32 %v129, 0.0
    %v158 = vxor.u32 %v157, 2147483648
    %v159 = vmul.f32 %v158, 1.442695
    %v160 = vpow.pop %v159
    %v161 = vadd.f32 %v160, 1.0
    %v162 = vrcp.pop %v161
    %v163 = vmul.f32 %v161, %v162
    %v164 = vsub.f32 1.0, %v163
    %v165 = vmul.f32 %v162, %v164
    %v166 = vadd.f32 %v162, %v165
    %vm167 = vweird.f32 %v161
    %vm168 = vweird.f32 %v162
    %vm169 = vmor %vm167, %vm168
    %v170 = vsel %vm169, %v162, %v166
    %v171 = vand.u32 2147483647, %v161
    %vm172 = vcmp.eq.f32.partialorder %v171, 8.507059e+37
    %v173 = vand.u32 %v161, 2147483648
    %v174 = vor.u32 1.1754944e-38, %v173
    %v175 = vsel %vm172, %v174, %v170
    %v176 = vmul.f32 1.0, %v175
    %v177 = vtanh.pop %v157
    %v178 = vmul.f32 %v176, 0.0
    %180 = vrot.lane.b32.xlu0 %v177, 64
    %v181 = vpop.permute.xlu0 %180
    %v183 = vmul.f32 %v176, %v181
    %185 = vrot.lane.b32.xlu0 %v183, 32
    %v186 = vpop.permute.xlu0 %185
    %v188 = vadd.f32 %v178, %v186
    %v189 = vtanh.pop %v188
    %191 = vrot.lane.b32.xlu0 %v189, 64
    %v192 = vpop.permute.xlu0 %191
    %v194 = vmul.f32 %v176, %v192
    %196 = vrot.lane.b32.xlu0 %v194, 32
    %v197 = vpop.permute.xlu0 %196
    %v198 = vsel %vm101, %v197, 0
    %200 = vmatpush.msra.mxu0 0.0
    %201 = vmatpush.msra.mxu0 0.0
    %202 = vmatpush.msra.mxu0 0.0
    %203 = vmatpush.msra.mxu0 0.0
    %204 = vmatpush.msra.mxu0 0.0
    %205 = vmatpush.msra.mxu0 0.0
    %206 = vmatpush.msra.mxu0 0.0
    %207 = vmatpush.msra.mxu0 0.0
    %208 = vmatpush.msra.mxu0 0.0
    %209 = vmatpush.msra.mxu0 0.0
    %210 = vmatpush.msra.mxu0 0.0
    %211 = vmatpush.msra.mxu0 0.0
    %212 = vmatpush.msra.mxu0 %v143
    %213 = vmatpush.msra.mxu0 %v141
    %214 = vmatpush.msra.mxu0 %v139
    %215 = vmatpush.msra.mxu0 %v137
    %216 = vmatmul.f32.gmra.mxu0 %v198
    %v217 = vpop.f32.mrf.mxu0
    %v218 = vadd.f32 0.0, %v217
    %219 = vdwg.mxu0
    %220 = vmatpush.msra.mxu0 0.0
    %221 = vmatpush.msra.mxu0 0.0
    %222 = vmatpush.msra.mxu0 0.0
    %223 = vmatpush.msra.mxu0 0.0
    %224 = vmatpush.msra.mxu0 0.0
    %225 = vmatpush.msra.mxu0 0.0
    %226 = vmatpush.msra.mxu0 0.0
    %227 = vmatpush.msra.mxu0 0.0
    %228 = vmatpush.msra.mxu0 0.0
    %229 = vmatpush.msra.mxu0 0.0
    %230 = vmatpush.msra.mxu0 0.0
    %231 = vmatpush.msra.mxu0 0.0
    %232 = vmatpush.msra.mxu0 %v144
    %233 = vmatpush.msra.mxu0 %v142
    %234 = vmatpush.msra.mxu0 %v140
    %235 = vmatpush.msra.mxu0 %v138
    %236 = vmatmul.f32.gmra.mxu0 %v198
    %v237 = vpop.f32.mrf.mxu0
    %v238 = vadd.f32 0.0, %v237
    %239 = vdwg.mxu0
    %v240 = vadd.f32 %v238, 0.0
    %v241 = vadd.f32 %v240, %v155
    %v242 = vxor.u32 %v241, 2147483648
    %v243 = vmul.f32 %v242, 1.442695
    %v244 = vpow.pop %v243
    %v245 = vadd.f32 %v244, 1.0
    %v246 = vrcp.pop %v245
    %v247 = vmul.f32 %v245, %v246
    %v248 = vsub.f32 1.0, %v247
    %v249 = vmul.f32 %v246, %v248
    %v250 = vadd.f32 %v246, %v249
    %vm251 = vweird.f32 %v245
    %vm252 = vweird.f32 %v246
    %vm253 = vmor %vm251, %vm252
    %v254 = vsel %vm253, %v246, %v250
    %v255 = vand.u32 2147483647, %v245
    %vm256 = vcmp.eq.f32.partialorder %v255, 8.507059e+37
    %v257 = vand.u32 %v245, 2147483648
    %v258 = vor.u32 1.1754944e-38, %v257
    %v259 = vsel %vm256, %v258, %v254
    %v260 = vmul.f32 1.0, %v259
    %v261 = vtanh.pop %v241
    %v262 = vmul.f32 %v260, 0.0
    %264 = vrot.lane.b32.xlu0 %v261, 64
    %v265 = vpop.permute.xlu0 %264
    %v267 = vmul.f32 %v260, %v265
    %269 = vrot.lane.b32.xlu0 %v267, 32
    %v270 = vpop.permute.xlu0 %269
    %v272 = vadd.f32 %v262, %v270
    %v273 = vtanh.pop %v272
    %275 = vrot.lane.b32.xlu0 %v273, 64
    %v276 = vpop.permute.xlu0 %275
    %v278 = vmul.f32 %v260, %v276
    %280 = vrot.lane.b32.xlu0 %v278, 32
    %v281 = vpop.permute.xlu0 %280
    %v282 = vsel %vm101, %v281, 0
    %284 = vmatpush.msra.mxu0 0.0
    %285 = vmatpush.msra.mxu0 0.0
    %286 = vmatpush.msra.mxu0 0.0
    %287 = vmatpush.msra.mxu0 0.0
    %288 = vmatpush.msra.mxu0 0.0
    %289 = vmatpush.msra.mxu0 0.0
    %290 = vmatpush.msra.mxu0 0.0
    %291 = vmatpush.msra.mxu0 0.0
    %292 = vmatpush.msra.mxu0 0.0
    %293 = vmatpush.msra.mxu0 0.0
    %294 = vmatpush.msra.mxu0 0.0
    %295 = vmatpush.msra.mxu0 0.0
    %296 = vmatpush.msra.mxu0 %v151
    %297 = vmatpush.msra.mxu0 %v149
    %298 = vmatpush.msra.mxu0 %v147
    %299 = vmatpush.msra.mxu0 %v145
    %300 = vmatmul.f32.gmra.mxu0 %v282
    %v301 = vpop.f32.mrf.mxu0
    %v302 = vadd.f32 0.0, %v301
    %303 = vdwg.mxu0
    %304 = vmatpush.msra.mxu0 0.0
    %305 = vmatpush.msra.mxu0 0.0
    %306 = vmatpush.msra.mxu0 0.0
    %307 = vmatpush.msra.mxu0 0.0
    %308 = vmatpush.msra.mxu0 0.0
    %309 = vmatpush.msra.mxu0 0.0
    %310 = vmatpush.msra.mxu0 0.0
    %311 = vmatpush.msra.mxu0 0.0
    %312 = vmatpush.msra.mxu0 0.0
    %313 = vmatpush.msra.mxu0 0.0
    %314 = vmatpush.msra.mxu0 0.0
    %315 = vmatpush.msra.mxu0 0.0
    %316 = vmatpush.msra.mxu0 %v152
    %317 = vmatpush.msra.mxu0 %v150
    %318 = vmatpush.msra.mxu0 %v148
    %319 = vmatpush.msra.mxu0 %v146
    %320 = vmatmul.f32.gmra.mxu0 %v282
    %v321 = vpop.f32.mrf.mxu0
    %v322 = vadd.f32 0.0, %v321
    %323 = vdwg.mxu0
    %v325 = vrot.slane %v218, 6
    %v327 = vadd.f32 %v129, %v325
    %v328 = vxor.u32 %v327, 2147483648
    %v329 = vmul.f32 %v328, 1.442695
    %v330 = vpow.pop %v329
    %v331 = vadd.f32 %v330, 1.0
    %v332 = vrcp.pop %v331
    %v333 = vmul.f32 %v331, %v332
    %v334 = vsub.f32 1.0, %v333
    %v335 = vmul.f32 %v332, %v334
    %v336 = vadd.f32 %v332, %v335
    %vm337 = vweird.f32 %v331
    %vm338 = vweird.f32 %v332
    %vm339 = vmor %vm337, %vm338
    %v340 = vsel %vm339, %v332, %v336
    %v341 = vand.u32 2147483647, %v331
    %vm342 = vcmp.eq.f32.partialorder %v341, 8.507059e+37
    %v343 = vand.u32 %v331, 2147483648
    %v344 = vor.u32 1.1754944e-38, %v343
    %v345 = vsel %vm342, %v344, %v340
    %v346 = vmul.f32 1.0, %v345
    %v347 = vtanh.pop %v327
    %v349 = vrot.slane %v188, 6
    %v351 = vmul.f32 %v346, %v349
    %353 = vrot.lane.b32.xlu0 %v347, 64
    %v354 = vpop.permute.xlu0 %353
    %v356 = vmul.f32 %v346, %v354
    %358 = vrot.lane.b32.xlu0 %v356, 32
    %v359 = vpop.permute.xlu0 %358
    %v361 = vadd.f32 %v351, %v359
    %v362 = vtanh.pop %v361
    %364 = vrot.lane.b32.xlu0 %v362, 64
    %v365 = vpop.permute.xlu0 %364
    %v367 = vmul.f32 %v346, %v365
    %v369 = vrot.slane %v367, 2
    %370 = vrot.lane.b32.xlu0 %v369, 32
    %v371 = vpop.permute.xlu0 %370
    %v372 = vsel %vm101, %v371, 0
    %374 = vmatpush.msra.mxu0 0.0
    %375 = vmatpush.msra.mxu0 0.0
    %376 = vmatpush.msra.mxu0 0.0
    %377 = vmatpush.msra.mxu0 0.0
    %378 = vmatpush.msra.mxu0 0.0
    %379 = vmatpush.msra.mxu0 0.0
    %380 = vmatpush.msra.mxu0 0.0
    %381 = vmatpush.msra.mxu0 0.0
    %382 = vmatpush.msra.mxu0 0.0
    %383 = vmatpush.msra.mxu0 0.0
    %384 = vmatpush.msra.mxu0 0.0
    %385 = vmatpush.msra.mxu0 0.0
    %386 = vmatpush.msra.mxu0 %v143
    %387 = vmatpush.msra.mxu0 %v141
    %388 = vmatpush.msra.mxu0 %v139
    %389 = vmatpush.msra.mxu0 %v137
    %390 = vmatmul.f32.gmra.mxu0 %v372
    %v391 = vpop.f32.mrf.mxu0
    %v392 = vadd.f32 0.0, %v391
    %393 = vdwg.mxu0
    %394 = vmatpush.msra.mxu0 0.0
    %395 = vmatpush.msra.mxu0 0.0
    %396 = vmatpush.msra.mxu0 0.0
    %397 = vmatpush.msra.mxu0 0.0
    %398 = vmatpush.msra.mxu0 0.0
    %399 = vmatpush.msra.mxu0 0.0
    %400 = vmatpush.msra.mxu0 0.0
    %401 = vmatpush.msra.mxu0 0.0
    %402 = vmatpush.msra.mxu0 0.0
    %403 = vmatpush.msra.mxu0 0.0
    %404 = vmatpush.msra.mxu0 0.0
    %405 = vmatpush.msra.mxu0 0.0
    %406 = vmatpush.msra.mxu0 %v144
    %407 = vmatpush.msra.mxu0 %v142
    %408 = vmatpush.msra.mxu0 %v140
    %409 = vmatpush.msra.mxu0 %v138
    %410 = vmatmul.f32.gmra.mxu0 %v372
    %v411 = vpop.f32.mrf.mxu0
    %v412 = vadd.f32 0.0, %v411
    %413 = vdwg.mxu0
    %v414 = vadd.f32 %v412, %v302
    %v415 = vadd.f32 %v414, %v155
    %v416 = vxor.u32 %v415, 2147483648
    %v417 = vmul.f32 %v416, 1.442695
    %v418 = vpow.pop %v417
    %v419 = vadd.f32 %v418, 1.0
    %v420 = vrcp.pop %v419
    %v421 = vmul.f32 %v419, %v420
    %v422 = vsub.f32 1.0, %v421
    %v423 = vmul.f32 %v420, %v422
    %v424 = vadd.f32 %v420, %v423
    %vm425 = vweird.f32 %v419
    %vm426 = vweird.f32 %v420
    %vm427 = vmor %vm425, %vm426
    %v428 = vsel %vm427, %v420, %v424
    %v429 = vand.u32 2147483647, %v419
    %vm430 = vcmp.eq.f32.partialorder %v429, 8.507059e+37
    %v431 = vand.u32 %v419, 2147483648
    %v432 = vor.u32 1.1754944e-38, %v431
    %v433 = vsel %vm430, %v432, %v428
    %v434 = vmul.f32 1.0, %v433
    %v435 = vtanh.pop %v415
    %v436 = vmul.f32 %v434, %v272
    %438 = vrot.lane.b32.xlu0 %v435, 64
    %v439 = vpop.permute.xlu0 %438
    %v441 = vmul.f32 %v434, %v439
    %443 = vrot.lane.b32.xlu0 %v441, 32
    %v444 = vpop.permute.xlu0 %443
    %v446 = vadd.f32 %v436, %v444
    %v447 = vtanh.pop %v446
    %449 = vrot.lane.b32.xlu0 %v447, 64
    %v450 = vpop.permute.xlu0 %449
    %v452 = vmul.f32 %v434, %v450
    %454 = vrot.lane.b32.xlu0 %v452, 32
    %v455 = vpop.permute.xlu0 %454
    %v456 = vsel %vm101, %v455, 0
    %458 = vmatpush.msra.mxu0 0.0
    %459 = vmatpush.msra.mxu0 0.0
    %460 = vmatpush.msra.mxu0 0.0
    %461 = vmatpush.msra.mxu0 0.0
    %462 = vmatpush.msra.mxu0 0.0
    %463 = vmatpush.msra.mxu0 0.0
    %464 = vmatpush.msra.mxu0 0.0
    %465 = vmatpush.msra.mxu0 0.0
    %466 = vmatpush.msra.mxu0 0.0
    %467 = vmatpush.msra.mxu0 0.0
    %468 = vmatpush.msra.mxu0 0.0
    %469 = vmatpush.msra.mxu0 0.0
    %470 = vmatpush.msra.mxu0 %v151
    %471 = vmatpush.msra.mxu0 %v149
    %472 = vmatpush.msra.mxu0 %v147
    %473 = vmatpush.msra.mxu0 %v145
    %474 = vmatmul.f32.gmra.mxu0 %v456
    %v475 = vpop.f32.mrf.mxu0
    %v476 = vadd.f32 0.0, %v475
    %477 = vdwg.mxu0
    %478 = vmatpush.msra.mxu0 0.0
    %479 = vmatpush.msra.mxu0 0.0
    %480 = vmatpush.msra.mxu0 0.0
    %481 = vmatpush.msra.mxu0 0.0
    %482 = vmatpush.msra.mxu0 0.0
    %483 = vmatpush.msra.mxu0 0.0
    %484 = vmatpush.msra.mxu0 0.0
    %485 = vmatpush.msra.mxu0 0.0
    %486 = vmatpush.msra.mxu0 0.0
    %487 = vmatpush.msra.mxu0 0.0
    %488 = vmatpush.msra.mxu0 0.0
    %489 = vmatpush.msra.mxu0 0.0
    %490 = vmatpush.msra.mxu0 %v152
    %491 = vmatpush.msra.mxu0 %v150
    %492 = vmatpush.msra.mxu0 %v148
    %493 = vmatpush.msra.mxu0 %v146
    %494 = vmatmul.f32.gmra.mxu0 %v456
    %v495 = vpop.f32.mrf.mxu0
    %v496 = vadd.f32 0.0, %v495
    %497 = vdwg.mxu0
    %v499 = vrot.slane %v392, 4
    %v501 = vadd.f32 %v129, %v499
    %v502 = vxor.u32 %v501, 2147483648
    %v503 = vmul.f32 %v502, 1.442695
    %v504 = vpow.pop %v503
    %v505 = vadd.f32 %v504, 1.0
    %v506 = vrcp.pop %v505
    %v507 = vmul.f32 %v505, %v506
    %v508 = vsub.f32 1.0, %v507
    %v509 = vmul.f32 %v506, %v508
    %v510 = vadd.f32 %v506, %v509
    %vm511 = vweird.f32 %v505
    %vm512 = vweird.f32 %v506
    %vm513 = vmor %vm511, %vm512
    %v514 = vsel %vm513, %v506, %v510
    %v515 = vand.u32 2147483647, %v505
    %vm516 = vcmp.eq.f32.partialorder %v515, 8.507059e+37
    %v517 = vand.u32 %v505, 2147483648
    %v518 = vor.u32 1.1754944e-38, %v517
    %v519 = vsel %vm516, %v518, %v514
    %v520 = vmul.f32 1.0, %v519
    %v521 = vtanh.pop %v501
    %v523 = vrot.slane %v361, 6
    %v525 = vmul.f32 %v520, %v523
    %527 = vrot.lane.b32.xlu0 %v521, 64
    %v528 = vpop.permute.xlu0 %527
    %v530 = vmul.f32 %v520, %v528
    %532 = vrot.lane.b32.xlu0 %v530, 32
    %v533 = vpop.permute.xlu0 %532
    %v535 = vadd.f32 %v525, %v533
    %v536 = vtanh.pop %v535
    %538 = vrot.lane.b32.xlu0 %v536, 64
    %v539 = vpop.permute.xlu0 %538
    %v541 = vmul.f32 %v520, %v539
    %v543 = vrot.slane %v541, 4
    %544 = vrot.lane.b32.xlu0 %v543, 32
    %v545 = vpop.permute.xlu0 %544
    %v546 = vsel %vm101, %v545, 0
    %548 = vmatpush.msra.mxu0 0.0
    %549 = vmatpush.msra.mxu0 0.0
    %550 = vmatpush.msra.mxu0 0.0
    %551 = vmatpush.msra.mxu0 0.0
    %552 = vmatpush.msra.mxu0 0.0
    %553 = vmatpush.msra.mxu0 0.0
    %554 = vmatpush.msra.mxu0 0.0
    %555 = vmatpush.msra.mxu0 0.0
    %556 = vmatpush.msra.mxu0 0.0
    %557 = vmatpush.msra.mxu0 0.0
    %558 = vmatpush.msra.mxu0 0.0
    %559 = vmatpush.msra.mxu0 0.0
    %560 = vmatpush.msra.mxu0 %v143
    %561 = vmatpush.msra.mxu0 %v141
    %562 = vmatpush.msra.mxu0 %v139
    %563 = vmatpush.msra.mxu0 %v137
    %564 = vmatmul.f32.gmra.mxu0 %v546
    %v565 = vpop.f32.mrf.mxu0
    %v566 = vadd.f32 0.0, %v565
    %567 = vdwg.mxu0
    %568 = vmatpush.msra.mxu0 0.0
    %569 = vmatpush.msra.mxu0 0.0
    %570 = vmatpush.msra.mxu0 0.0
    %571 = vmatpush.msra.mxu0 0.0
    %572 = vmatpush.msra.mxu0 0.0
    %573 = vmatpush.msra.mxu0 0.0
    %574 = vmatpush.msra.mxu0 0.0
    %575 = vmatpush.msra.mxu0 0.0
    %576 = vmatpush.msra.mxu0 0.0
    %577 = vmatpush.msra.mxu0 0.0
    %578 = vmatpush.msra.mxu0 0.0
    %579 = vmatpush.msra.mxu0 0.0
    %580 = vmatpush.msra.mxu0 %v144
    %581 = vmatpush.msra.mxu0 %v142
    %582 = vmatpush.msra.mxu0 %v140
    %583 = vmatpush.msra.mxu0 %v138
    %584 = vmatmul.f32.gmra.mxu0 %v546
    %v585 = vpop.f32.mrf.mxu0
    %v586 = vadd.f32 0.0, %v585
    %587 = vdwg.mxu0
    %v588 = vadd.f32 %v586, %v476
    %v589 = vadd.f32 %v588, %v155
    %v590 = vxor.u32 %v589, 2147483648
    %v591 = vmul.f32 %v590, 1.442695
    %v592 = vpow.pop %v591
    %v593 = vadd.f32 %v592, 1.0
    %v594 = vrcp.pop %v593
    %v595 = vmul.f32 %v593, %v594
    %v596 = vsub.f32 1.0, %v595
    %v597 = vmul.f32 %v594, %v596
    %v598 = vadd.f32 %v594, %v597
    %vm599 = vweird.f32 %v593
    %vm600 = vweird.f32 %v594
    %vm601 = vmor %vm599, %vm600
    %v602 = vsel %vm601, %v594, %v598
    %v603 = vand.u32 2147483647, %v593
    %vm604 = vcmp.eq.f32.partialorder %v603, 8.507059e+37
    %v605 = vand.u32 %v593, 2147483648
    %v606 = vor.u32 1.1754944e-38, %v605
    %v607 = vsel %vm604, %v606, %v602
    %v608 = vmul.f32 1.0, %v607
    %v609 = vtanh.pop %v589
    %v610 = vmul.f32 %v608, %v446
    %612 = vrot.lane.b32.xlu0 %v609, 64
    %v613 = vpop.permute.xlu0 %612
    %v615 = vmul.f32 %v608, %v613
    %617 = vrot.lane.b32.xlu0 %v615, 32
    %v618 = vpop.permute.xlu0 %617
    %v620 = vadd.f32 %v610, %v618
    %v621 = vtanh.pop %v620
    %623 = vrot.lane.b32.xlu0 %v621, 64
    %v624 = vpop.permute.xlu0 %623
    %v626 = vmul.f32 %v608, %v624
    %628 = vrot.lane.b32.xlu0 %v626, 32
    %v629 = vpop.permute.xlu0 %628
    %v630 = vsel %vm101, %v629, 0
    %632 = vmatpush.msra.mxu0 0.0
    %633 = vmatpush.msra.mxu0 0.0
    %634 = vmatpush.msra.mxu0 0.0
    %635 = vmatpush.msra.mxu0 0.0
    %636 = vmatpush.msra.mxu0 0.0
    %637 = vmatpush.msra.mxu0 0.0
    %638 = vmatpush.msra.mxu0 0.0
    %639 = vmatpush.msra.mxu0 0.0
    %640 = vmatpush.msra.mxu0 0.0
    %641 = vmatpush.msra.mxu0 0.0
    %642 = vmatpush.msra.mxu0 0.0
    %643 = vmatpush.msra.mxu0 0.0
    %644 = vmatpush.msra.mxu0 %v151
    %645 = vmatpush.msra.mxu0 %v149
    %646 = vmatpush.msra.mxu0 %v147
    %647 = vmatpush.msra.mxu0 %v145
    %648 = vmatmul.f32.gmra.mxu0 %v630
    %v649 = vpop.f32.mrf.mxu0
    %v650 = vadd.f32 0.0, %v649
    %651 = vdwg.mxu0
    %652 = vmatpush.msra.mxu0 0.0
    %653 = vmatpush.msra.mxu0 0.0
    %654 = vmatpush.msra.mxu0 0.0
    %655 = vmatpush.msra.mxu0 0.0
    %656 = vmatpush.msra.mxu0 0.0
    %657 = vmatpush.msra.mxu0 0.0
    %658 = vmatpush.msra.mxu0 0.0
    %659 = vmatpush.msra.mxu0 0.0
    %660 = vmatpush.msra.mxu0 0.0
    %661 = vmatpush.msra.mxu0 0.0
    %662 = vmatpush.msra.mxu0 0.0
    %663 = vmatpush.msra.mxu0 0.0
    %664 = vmatpush.msra.mxu0 %v152
    %665 = vmatpush.msra.mxu0 %v150
    %666 = vmatpush.msra.mxu0 %v148
    %667 = vmatpush.msra.mxu0 %v146
    %668 = vmatmul.f32.gmra.mxu0 %v630
    %v669 = vpop.f32.mrf.mxu0
    %v670 = vadd.f32 0.0, %v669
    %671 = vdwg.mxu0
    %v673 = vrot.slane %v566, 2
    %v675 = vadd.f32 %v129, %v673
    %v676 = vxor.u32 %v675, 2147483648
    %v677 = vmul.f32 %v676, 1.442695
    %v678 = vpow.pop %v677
    %v679 = vadd.f32 %v678, 1.0
    %v680 = vrcp.pop %v679
    %v681 = vmul.f32 %v679, %v680
    %v682 = vsub.f32 1.0, %v681
    %v683 = vmul.f32 %v680, %v682
    %v684 = vadd.f32 %v680, %v683
    %vm685 = vweird.f32 %v679
    %vm686 = vweird.f32 %v680
    %vm687 = vmor %vm685, %vm686
    %v688 = vsel %vm687, %v680, %v684
    %v689 = vand.u32 2147483647, %v679
    %vm690 = vcmp.eq.f32.partialorder %v689, 8.507059e+37
    %v691 = vand.u32 %v679, 2147483648
    %v692 = vor.u32 1.1754944e-38, %v691
    %v693 = vsel %vm690, %v692, %v688
    %v694 = vmul.f32 1.0, %v693
    %v695 = vtanh.pop %v675
    %v697 = vrot.slane %v535, 6
    %v699 = vmul.f32 %v694, %v697
    %701 = vrot.lane.b32.xlu0 %v695, 64
    %v702 = vpop.permute.xlu0 %701
    %v704 = vmul.f32 %v694, %v702
    %706 = vrot.lane.b32.xlu0 %v704, 32
    %v707 = vpop.permute.xlu0 %706
    %v709 = vadd.f32 %v699, %v707
    %v710 = vtanh.pop %v709
    %712 = vrot.lane.b32.xlu0 %v710, 64
    %v713 = vpop.permute.xlu0 %712
    %v715 = vmul.f32 %v694, %v713
    %v717 = vrot.slane %v715, 6
    %718 = vrot.lane.b32.xlu0 %v717, 32
    %v719 = vpop.permute.xlu0 %718
    %v720 = vsel %vm101, %v719, 0
    %722 = vmatpush.msra.mxu0 0.0
    %723 = vmatpush.msra.mxu0 0.0
    %724 = vmatpush.msra.mxu0 0.0
    %725 = vmatpush.msra.mxu0 0.0
    %726 = vmatpush.msra.mxu0 0.0
    %727 = vmatpush.msra.mxu0 0.0
    %728 = vmatpush.msra.mxu0 0.0
    %729 = vmatpush.msra.mxu0 0.0
    %730 = vmatpush.msra.mxu0 0.0
    %731 = vmatpush.msra.mxu0 0.0
    %732 = vmatpush.msra.mxu0 0.0
    %733 = vmatpush.msra.mxu0 0.0
    %734 = vmatpush.msra.mxu0 %v143
    %735 = vmatpush.msra.mxu0 %v141
    %736 = vmatpush.msra.mxu0 %v139
    %737 = vmatpush.msra.mxu0 %v137
    %738 = vmatmul.f32.gmra.mxu0 %v720
    %v739 = vpop.f32.mrf.mxu0
    %v740 = vadd.f32 0.0, %v739
    %741 = vdwg.mxu0
    %742 = vmatpush.msra.mxu0 0.0
    %743 = vmatpush.msra.mxu0 0.0
    %744 = vmatpush.msra.mxu0 0.0
    %745 = vmatpush.msra.mxu0 0.0
    %746 = vmatpush.msra.mxu0 0.0
    %747 = vmatpush.msra.mxu0 0.0
    %748 = vmatpush.msra.mxu0 0.0
    %749 = vmatpush.msra.mxu0 0.0
    %750 = vmatpush.msra.mxu0 0.0
    %751 = vmatpush.msra.mxu0 0.0
    %752 = vmatpush.msra.mxu0 0.0
    %753 = vmatpush.msra.mxu0 0.0
    %754 = vmatpush.msra.mxu0 %v144
    %755 = vmatpush.msra.mxu0 %v142
    %756 = vmatpush.msra.mxu0 %v140
    %757 = vmatpush.msra.mxu0 %v138
    %758 = vmatmul.f32.gmra.mxu0 %v720
    %v759 = vpop.f32.mrf.mxu0
    %v760 = vadd.f32 0.0, %v759
    %761 = vdwg.mxu0
    %v762 = vadd.f32 %v760, %v650
    %v763 = vadd.f32 %v762, %v155
    %v764 = vxor.u32 %v763, 2147483648
    %v765 = vmul.f32 %v764, 1.442695
    %v766 = vpow.pop %v765
    %v767 = vadd.f32 %v766, 1.0
    %v768 = vrcp.pop %v767
    %v769 = vmul.f32 %v767, %v768
    %v770 = vsub.f32 1.0, %v769
    %v771 = vmul.f32 %v768, %v770
    %v772 = vadd.f32 %v768, %v771
    %vm773 = vweird.f32 %v767
    %vm774 = vweird.f32 %v768
    %vm775 = vmor %vm773, %vm774
    %v776 = vsel %vm775, %v768, %v772
    %v777 = vand.u32 2147483647, %v767
    %vm778 = vcmp.eq.f32.partialorder %v777, 8.507059e+37
    %v779 = vand.u32 %v767, 2147483648
    %v780 = vor.u32 1.1754944e-38, %v779
    %v781 = vsel %vm778, %v780, %v776
    %v782 = vmul.f32 1.0, %v781
    %v783 = vtanh.pop %v763
    %v784 = vmul.f32 %v782, %v620
    %786 = vrot.lane.b32.xlu0 %v783, 64
    %v787 = vpop.permute.xlu0 %786
    %v789 = vmul.f32 %v782, %v787
    %791 = vrot.lane.b32.xlu0 %v789, 32
    %v792 = vpop.permute.xlu0 %791
    %v794 = vadd.f32 %v784, %v792
    %v795 = vtanh.pop %v794
    %797 = vrot.lane.b32.xlu0 %v795, 64
    %v798 = vpop.permute.xlu0 %797
    %v800 = vmul.f32 %v782, %v798
    %802 = vrot.lane.b32.xlu0 %v800, 32
    %v803 = vpop.permute.xlu0 %802
    %v804 = vsel %vm101, %v803, 0
    %806 = vmatpush.msra.mxu0 0.0
    %807 = vmatpush.msra.mxu0 0.0
    %808 = vmatpush.msra.mxu0 0.0
    %809 = vmatpush.msra.mxu0 0.0
    %810 = vmatpush.msra.mxu0 0.0
    %811 = vmatpush.msra.mxu0 0.0
    %812 = vmatpush.msra.mxu0 0.0
    %813 = vmatpush.msra.mxu0 0.0
    %814 = vmatpush.msra.mxu0 0.0
    %815 = vmatpush.msra.mxu0 0.0
    %816 = vmatpush.msra.mxu0 0.0
    %817 = vmatpush.msra.mxu0 0.0
    %818 = vmatpush.msra.mxu0 %v151
    %819 = vmatpush.msra.mxu0 %v149
    %820 = vmatpush.msra.mxu0 %v147
    %821 = vmatpush.msra.mxu0 %v145
    %822 = vmatmul.f32.gmra.mxu0 %v804
    %v823 = vpop.f32.mrf.mxu0
    %v824 = vadd.f32 0.0, %v823
    %825 = vdwg.mxu0
    %826 = vmatpush.msra.mxu0 0.0
    %827 = vmatpush.msra.mxu0 0.0
    %828 = vmatpush.msra.mxu0 0.0
    %829 = vmatpush.msra.mxu0 0.0
    %830 = vmatpush.msra.mxu0 0.0
    %831 = vmatpush.msra.mxu0 0.0
    %832 = vmatpush.msra.mxu0 0.0
    %833 = vmatpush.msra.mxu0 0.0
    %834 = vmatpush.msra.mxu0 0.0
    %835 = vmatpush.msra.mxu0 0.0
    %836 = vmatpush.msra.mxu0 0.0
    %837 = vmatpush.msra.mxu0 0.0
    %838 = vmatpush.msra.mxu0 %v152
    %839 = vmatpush.msra.mxu0 %v150
    %840 = vmatpush.msra.mxu0 %v148
    %841 = vmatpush.msra.mxu0 %v146
    %842 = vmatmul.f32.gmra.mxu0 %v804
    %v843 = vpop.f32.mrf.mxu0
    %v844 = vadd.f32 0.0, %v843
    %845 = vdwg.mxu0
    %v846 = vadd.f32 %v132, %v740
    %v847 = vxor.u32 %v846, 2147483648
    %v848 = vmul.f32 %v847, 1.442695
    %v849 = vpow.pop %v848
    %v850 = vadd.f32 %v849, 1.0
    %v851 = vrcp.pop %v850
    %v852 = vmul.f32 %v850, %v851
    %v853 = vsub.f32 1.0, %v852
    %v854 = vmul.f32 %v851, %v853
    %v855 = vadd.f32 %v851, %v854
    %vm856 = vweird.f32 %v850
    %vm857 = vweird.f32 %v851
    %vm858 = vmor %vm856, %vm857
    %v859 = vsel %vm858, %v851, %v855
    %v860 = vand.u32 2147483647, %v850
    %vm861 = vcmp.eq.f32.partialorder %v860, 8.507059e+37
    %v862 = vand.u32 %v850, 2147483648
    %v863 = vor.u32 1.1754944e-38, %v862
    %v864 = vsel %vm861, %v863, %v859
    %v865 = vmul.f32 1.0, %v864
    %v866 = vtanh.pop %v846
    %v868 = vrot.slane %v709, 6
    %v870 = vmul.f32 %v865, %v868
    %872 = vrot.lane.b32.xlu0 %v866, 64
    %v873 = vpop.permute.xlu0 %872
    %v875 = vmul.f32 %v865, %v873
    %877 = vrot.lane.b32.xlu0 %v875, 32
    %v878 = vpop.permute.xlu0 %877
    %v880 = vadd.f32 %v870, %v878
    %v881 = vtanh.pop %v880
    %883 = vrot.lane.b32.xlu0 %v881, 64
    %v884 = vpop.permute.xlu0 %883
    %v886 = vmul.f32 %v865, %v884
    %888 = vrot.lane.b32.xlu0 %v886, 32
    %v889 = vpop.permute.xlu0 %888
    %v890 = vsel %vm101, %v889, 0
    %892 = vmatpush.msra.mxu0 0.0
    %893 = vmatpush.msra.mxu0 0.0
    %894 = vmatpush.msra.mxu0 0.0
    %895 = vmatpush.msra.mxu0 0.0
    %896 = vmatpush.msra.mxu0 0.0
    %897 = vmatpush.msra.mxu0 0.0
    %898 = vmatpush.msra.mxu0 0.0
    %899 = vmatpush.msra.mxu0 0.0
    %900 = vmatpush.msra.mxu0 0.0
    %901 = vmatpush.msra.mxu0 0.0
    %902 = vmatpush.msra.mxu0 0.0
    %903 = vmatpush.msra.mxu0 0.0
    %904 = vmatpush.msra.mxu0 %v143
    %905 = vmatpush.msra.mxu0 %v141
    %906 = vmatpush.msra.mxu0 %v139
    %907 = vmatpush.msra.mxu0 %v137
    %908 = vmatmul.f32.gmra.mxu0 %v890
    %v909 = vpop.f32.mrf.mxu0
    %v910 = vadd.f32 0.0, %v909
    %911 = vdwg.mxu0
    %912 = vmatpush.msra.mxu0 0.0
    %913 = vmatpush.msra.mxu0 0.0
    %914 = vmatpush.msra.mxu0 0.0
    %915 = vmatpush.msra.mxu0 0.0
    %916 = vmatpush.msra.mxu0 0.0
    %917 = vmatpush.msra.mxu0 0.0
    %918 = vmatpush.msra.mxu0 0.0
    %919 = vmatpush.msra.mxu0 0.0
    %920 = vmatpush.msra.mxu0 0.0
    %921 = vmatpush.msra.mxu0 0.0
    %922 = vmatpush.msra.mxu0 0.0
    %923 = vmatpush.msra.mxu0 0.0
    %924 = vmatpush.msra.mxu0 %v144
    %925 = vmatpush.msra.mxu0 %v142
    %926 = vmatpush.msra.mxu0 %v140
    %927 = vmatpush.msra.mxu0 %v138
    %928 = vmatmul.f32.gmra.mxu0 %v890
    %v929 = vpop.f32.mrf.mxu0
    %v930 = vadd.f32 0.0, %v929
    %931 = vdwg.mxu0
    %v932 = vadd.f32 %v930, %v824
    %v933 = vadd.f32 %v932, %v155
    %v934 = vxor.u32 %v933, 2147483648
    %v935 = vmul.f32 %v934, 1.442695
    %v936 = vpow.pop %v935
    %v937 = vadd.f32 %v936, 1.0
    %v938 = vrcp.pop %v937
    %v939 = vmul.f32 %v937, %v938
    %v940 = vsub.f32 1.0, %v939
    %v941 = vmul.f32 %v938, %v940
    %v942 = vadd.f32 %v938, %v941
    %vm943 = vweird.f32 %v937
    %vm944 = vweird.f32 %v938
    %vm945 = vmor %vm943, %vm944
    %v946 = vsel %vm945, %v938, %v942
    %v947 = vand.u32 2147483647, %v937
    %vm948 = vcmp.eq.f32.partialorder %v947, 8.507059e+37
    %v949 = vand.u32 %v937, 2147483648
    %v950 = vor.u32 1.1754944e-38, %v949
    %v951 = vsel %vm948, %v950, %v946
    %v952 = vmul.f32 1.0, %v951
    %v953 = vtanh.pop %v933
    %v954 = vmul.f32 %v952, %v794
    %956 = vrot.lane.b32.xlu0 %v953, 64
    %v957 = vpop.permute.xlu0 %956
    %v959 = vmul.f32 %v952, %v957
    %961 = vrot.lane.b32.xlu0 %v959, 32
    %v962 = vpop.permute.xlu0 %961
    %v964 = vadd.f32 %v954, %v962
    %v965 = vtanh.pop %v964
    %967 = vrot.lane.b32.xlu0 %v965, 64
    %v968 = vpop.permute.xlu0 %967
    %v970 = vmul.f32 %v952, %v968
    %972 = vrot.lane.b32.xlu0 %v970, 32
    %v973 = vpop.permute.xlu0 %972
    %v974 = vsel %vm101, %v973, 0
    %976 = vmatpush.msra.mxu0 0.0
    %977 = vmatpush.msra.mxu0 0.0
    %978 = vmatpush.msra.mxu0 0.0
    %979 = vmatpush.msra.mxu0 0.0
    %980 = vmatpush.msra.mxu0 0.0
    %981 = vmatpush.msra.mxu0 0.0
    %982 = vmatpush.msra.mxu0 0.0
    %983 = vmatpush.msra.mxu0 0.0
    %984 = vmatpush.msra.mxu0 0.0
    %985 = vmatpush.msra.mxu0 0.0
    %986 = vmatpush.msra.mxu0 0.0
    %987 = vmatpush.msra.mxu0 0.0
    %988 = vmatpush.msra.mxu0 %v151
    %989 = vmatpush.msra.mxu0 %v149
    %990 = vmatpush.msra.mxu0 %v147
    %991 = vmatpush.msra.mxu0 %v145
    %992 = vmatmul.f32.gmra.mxu0 %v974
    %v993 = vpop.f32.mrf.mxu0
    %v994 = vadd.f32 0.0, %v993
    %995 = vdwg.mxu0
    %996 = vmatpush.msra.mxu0 0.0
    %997 = vmatpush.msra.mxu0 0.0
    %998 = vmatpush.msra.mxu0 0.0
    %999 = vmatpush.msra.mxu0 0.0
    %1000 = vmatpush.msra.mxu0 0.0
    %1001 = vmatpush.msra.mxu0 0.0
    %1002 = vmatpush.msra.mxu0 0.0
    %1003 = vmatpush.msra.mxu0 0.0
    %1004 = vmatpush.msra.mxu0 0.0
    %1005 = vmatpush.msra.mxu0 0.0
    %1006 = vmatpush.msra.mxu0 0.0
    %1007 = vmatpush.msra.mxu0 0.0
    %1008 = vmatpush.msra.mxu0 %v152
    %1009 = vmatpush.msra.mxu0 %v150
    %1010 = vmatpush.msra.mxu0 %v148
    %1011 = vmatpush.msra.mxu0 %v146
    %1012 = vmatmul.f32.gmra.mxu0 %v974
    %v1013 = vpop.f32.mrf.mxu0
    %v1014 = vadd.f32 0.0, %v1013
    %1015 = vdwg.mxu0
    %v1017 = vrot.slane %v910, 6
    %v1019 = vadd.f32 %v132, %v1017
    %v1020 = vxor.u32 %v1019, 2147483648
    %v1021 = vmul.f32 %v1020, 1.442695
    %v1022 = vpow.pop %v1021
    %v1023 = vadd.f32 %v1022, 1.0
    %v1024 = vrcp.pop %v1023
    %v1025 = vmul.f32 %v1023, %v1024
    %v1026 = vsub.f32 1.0, %v1025
    %v1027 = vmul.f32 %v1024, %v1026
    %v1028 = vadd.f32 %v1024, %v1027
    %vm1029 = vweird.f32 %v1023
    %vm1030 = vweird.f32 %v1024
    %vm1031 = vmor %vm1029, %vm1030
    %v1032 = vsel %vm1031, %v1024, %v1028
    %v1033 = vand.u32 2147483647, %v1023
    %vm1034 = vcmp.eq.f32.partialorder %v1033, 8.507059e+37
    %v1035 = vand.u32 %v1023, 2147483648
    %v1036 = vor.u32 1.1754944e-38, %v1035
    %v1037 = vsel %vm1034, %v1036, %v1032
    %v1038 = vmul.f32 1.0, %v1037
    %v1039 = vtanh.pop %v1019
    %v1041 = vrot.slane %v880, 6
    %v1043 = vmul.f32 %v1038, %v1041
    %1045 = vrot.lane.b32.xlu0 %v1039, 64
    %v1046 = vpop.permute.xlu0 %1045
    %v1048 = vmul.f32 %v1038, %v1046
    %1050 = vrot.lane.b32.xlu0 %v1048, 32
    %v1051 = vpop.permute.xlu0 %1050
    %v1053 = vadd.f32 %v1043, %v1051
    %v1054 = vtanh.pop %v1053
    %1056 = vrot.lane.b32.xlu0 %v1054, 64
    %v1057 = vpop.permute.xlu0 %1056
    %v1059 = vmul.f32 %v1038, %v1057
    %v1061 = vrot.slane %v1059, 2
    %1062 = vrot.lane.b32.xlu0 %v1061, 32
    %v1063 = vpop.permute.xlu0 %1062
    %v1064 = vsel %vm101, %v1063, 0
    %1066 = vmatpush.msra.mxu0 0.0
    %1067 = vmatpush.msra.mxu0 0.0
    %1068 = vmatpush.msra.mxu0 0.0
    %1069 = vmatpush.msra.mxu0 0.0
    %1070 = vmatpush.msra.mxu0 0.0
    %1071 = vmatpush.msra.mxu0 0.0
    %1072 = vmatpush.msra.mxu0 0.0
    %1073 = vmatpush.msra.mxu0 0.0
    %1074 = vmatpush.msra.mxu0 0.0
    %1075 = vmatpush.msra.mxu0 0.0
    %1076 = vmatpush.msra.mxu0 0.0
    %1077 = vmatpush.msra.mxu0 0.0
    %1078 = vmatpush.msra.mxu0 %v143
    %1079 = vmatpush.msra.mxu0 %v141
    %1080 = vmatpush.msra.mxu0 %v139
    %1081 = vmatpush.msra.mxu0 %v137
    %1082 = vmatmul.f32.gmra.mxu0 %v1064
    %v1083 = vpop.f32.mrf.mxu0
    %v1084 = vadd.f32 0.0, %v1083
    %1085 = vdwg.mxu0
    %1086 = vmatpush.msra.mxu0 0.0
    %1087 = vmatpush.msra.mxu0 0.0
    %1088 = vmatpush.msra.mxu0 0.0
    %1089 = vmatpush.msra.mxu0 0.0
    %1090 = vmatpush.msra.mxu0 0.0
    %1091 = vmatpush.msra.mxu0 0.0
    %1092 = vmatpush.msra.mxu0 0.0
    %1093 = vmatpush.msra.mxu0 0.0
    %1094 = vmatpush.msra.mxu0 0.0
    %1095 = vmatpush.msra.mxu0 0.0
    %1096 = vmatpush.msra.mxu0 0.0
    %1097 = vmatpush.msra.mxu0 0.0
    %1098 = vmatpush.msra.mxu0 %v144
    %1099 = vmatpush.msra.mxu0 %v142
    %1100 = vmatpush.msra.mxu0 %v140
    %1101 = vmatpush.msra.mxu0 %v138
    %1102 = vmatmul.f32.gmra.mxu0 %v1064
    %v1103 = vpop.f32.mrf.mxu0
    %v1104 = vadd.f32 0.0, %v1103
    %1105 = vdwg.mxu0
    %v1106 = vadd.f32 %v1104, %v994
    %v1107 = vadd.f32 %v1106, %v155
    %v1108 = vxor.u32 %v1107, 2147483648
    %v1109 = vmul.f32 %v1108, 1.442695
    %v1110 = vpow.pop %v1109
    %v1111 = vadd.f32 %v1110, 1.0
    %v1112 = vrcp.pop %v1111
    %v1113 = vmul.f32 %v1111, %v1112
    %v1114 = vsub.f32 1.0, %v1113
    %v1115 = vmul.f32 %v1112, %v1114
    %v1116 = vadd.f32 %v1112, %v1115
    %vm1117 = vweird.f32 %v1111
    %vm1118 = vweird.f32 %v1112
    %vm1119 = vmor %vm1117, %vm1118
    %v1120 = vsel %vm1119, %v1112, %v1116
    %v1121 = vand.u32 2147483647, %v1111
    %vm1122 = vcmp.eq.f32.partialorder %v1121, 8.507059e+37
    %v1123 = vand.u32 %v1111, 2147483648
    %v1124 = vor.u32 1.1754944e-38, %v1123
    %v1125 = vsel %vm1122, %v1124, %v1120
    %v1126 = vmul.f32 1.0, %v1125
    %v1127 = vtanh.pop %v1107
    %v1128 = vmul.f32 %v1126, %v964
    %1130 = vrot.lane.b32.xlu0 %v1127, 64
    %v1131 = vpop.permute.xlu0 %1130
    %v1133 = vmul.f32 %v1126, %v1131
    %1135 = vrot.lane.b32.xlu0 %v1133, 32
    %v1136 = vpop.permute.xlu0 %1135
    %v1138 = vadd.f32 %v1128, %v1136
    %v1139 = vtanh.pop %v1138
    %1141 = vrot.lane.b32.xlu0 %v1139, 64
    %v1142 = vpop.permute.xlu0 %1141
    %v1144 = vmul.f32 %v1126, %v1142
    %1146 = vrot.lane.b32.xlu0 %v1144, 32
    %v1147 = vpop.permute.xlu0 %1146
    %v1148 = vsel %vm101, %v1147, 0
    %1150 = vmatpush.msra.mxu0 0.0
    %1151 = vmatpush.msra.mxu0 0.0
    %1152 = vmatpush.msra.mxu0 0.0
    %1153 = vmatpush.msra.mxu0 0.0
    %1154 = vmatpush.msra.mxu0 0.0
    %1155 = vmatpush.msra.mxu0 0.0
    %1156 = vmatpush.msra.mxu0 0.0
    %1157 = vmatpush.msra.mxu0 0.0
    %1158 = vmatpush.msra.mxu0 0.0
    %1159 = vmatpush.msra.mxu0 0.0
    %1160 = vmatpush.msra.mxu0 0.0
    %1161 = vmatpush.msra.mxu0 0.0
    %1162 = vmatpush.msra.mxu0 %v151
    %1163 = vmatpush.msra.mxu0 %v149
    %1164 = vmatpush.msra.mxu0 %v147
    %1165 = vmatpush.msra.mxu0 %v145
    %1166 = vmatmul.f32.gmra.mxu0 %v1148
    %v1167 = vpop.f32.mrf.mxu0
    %v1168 = vadd.f32 0.0, %v1167
    %1169 = vdwg.mxu0
    %1170 = vmatpush.msra.mxu0 0.0
    %1171 = vmatpush.msra.mxu0 0.0
    %1172 = vmatpush.msra.mxu0 0.0
    %1173 = vmatpush.msra.mxu0 0.0
    %1174 = vmatpush.msra.mxu0 0.0
    %1175 = vmatpush.msra.mxu0 0.0
    %1176 = vmatpush.msra.mxu0 0.0
    %1177 = vmatpush.msra.mxu0 0.0
    %1178 = vmatpush.msra.mxu0 0.0
    %1179 = vmatpush.msra.mxu0 0.0
    %1180 = vmatpush.msra.mxu0 0.0
    %1181 = vmatpush.msra.mxu0 0.0
    %1182 = vmatpush.msra.mxu0 %v152
    %1183 = vmatpush.msra.mxu0 %v150
    %1184 = vmatpush.msra.mxu0 %v148
    %1185 = vmatpush.msra.mxu0 %v146
    %1186 = vmatmul.f32.gmra.mxu0 %v1148
    %v1187 = vpop.f32.mrf.mxu0
    %v1188 = vadd.f32 0.0, %v1187
    %1189 = vdwg.mxu0
    %v1191 = vrot.slane %v1084, 4
    %v1193 = vadd.f32 %v132, %v1191
    %v1194 = vxor.u32 %v1193, 2147483648
    %v1195 = vmul.f32 %v1194, 1.442695
    %v1196 = vpow.pop %v1195
    %v1197 = vadd.f32 %v1196, 1.0
    %v1198 = vrcp.pop %v1197
    %v1199 = vmul.f32 %v1197, %v1198
    %v1200 = vsub.f32 1.0, %v1199
    %v1201 = vmul.f32 %v1198, %v1200
    %v1202 = vadd.f32 %v1198, %v1201
    %vm1203 = vweird.f32 %v1197
    %vm1204 = vweird.f32 %v1198
    %vm1205 = vmor %vm1203, %vm1204
    %v1206 = vsel %vm1205, %v1198, %v1202
    %v1207 = vand.u32 2147483647, %v1197
    %vm1208 = vcmp.eq.f32.partialorder %v1207, 8.507059e+37
    %v1209 = vand.u32 %v1197, 2147483648
    %v1210 = vor.u32 1.1754944e-38, %v1209
    %v1211 = vsel %vm1208, %v1210, %v1206
    %v1212 = vmul.f32 1.0, %v1211
    %v1213 = vtanh.pop %v1193
    %v1215 = vrot.slane %v1053, 6
    %v1217 = vmul.f32 %v1212, %v1215
    %1219 = vrot.lane.b32.xlu0 %v1213, 64
    %v1220 = vpop.permute.xlu0 %1219
    %v1222 = vmul.f32 %v1212, %v1220
    %1224 = vrot.lane.b32.xlu0 %v1222, 32
    %v1225 = vpop.permute.xlu0 %1224
    %v1227 = vadd.f32 %v1217, %v1225
    %v1228 = vtanh.pop %v1227
    %1230 = vrot.lane.b32.xlu0 %v1228, 64
    %v1231 = vpop.permute.xlu0 %1230
    %v1233 = vmul.f32 %v1212, %v1231
    %v1235 = vrot.slane %v1233, 4
    %1236 = vrot.lane.b32.xlu0 %v1235, 32
    %v1237 = vpop.permute.xlu0 %1236
    %v1238 = vsel %vm101, %v1237, 0
    %1240 = vmatpush.msra.mxu0 0.0
    %1241 = vmatpush.msra.mxu0 0.0
    %1242 = vmatpush.msra.mxu0 0.0
    %1243 = vmatpush.msra.mxu0 0.0
    %1244 = vmatpush.msra.mxu0 0.0
    %1245 = vmatpush.msra.mxu0 0.0
    %1246 = vmatpush.msra.mxu0 0.0
    %1247 = vmatpush.msra.mxu0 0.0
    %1248 = vmatpush.msra.mxu0 0.0
    %1249 = vmatpush.msra.mxu0 0.0
    %1250 = vmatpush.msra.mxu0 0.0
    %1251 = vmatpush.msra.mxu0 0.0
    %1252 = vmatpush.msra.mxu0 %v143
    %1253 = vmatpush.msra.mxu0 %v141
    %1254 = vmatpush.msra.mxu0 %v139
    %1255 = vmatpush.msra.mxu0 %v137
    %1256 = vmatmul.f32.gmra.mxu0 %v1238
    %v1257 = vpop.f32.mrf.mxu0
    %v1258 = vadd.f32 0.0, %v1257
    %1259 = vdwg.mxu0
    %1260 = vmatpush.msra.mxu0 0.0
    %1261 = vmatpush.msra.mxu0 0.0
    %1262 = vmatpush.msra.mxu0 0.0
    %1263 = vmatpush.msra.mxu0 0.0
    %1264 = vmatpush.msra.mxu0 0.0
    %1265 = vmatpush.msra.mxu0 0.0
    %1266 = vmatpush.msra.mxu0 0.0
    %1267 = vmatpush.msra.mxu0 0.0
    %1268 = vmatpush.msra.mxu0 0.0
    %1269 = vmatpush.msra.mxu0 0.0
    %1270 = vmatpush.msra.mxu0 0.0
    %1271 = vmatpush.msra.mxu0 0.0
    %1272 = vmatpush.msra.mxu0 %v144
    %1273 = vmatpush.msra.mxu0 %v142
    %1274 = vmatpush.msra.mxu0 %v140
    %1275 = vmatpush.msra.mxu0 %v138
    %1276 = vmatmul.f32.gmra.mxu0 %v1238
    %v1277 = vpop.f32.mrf.mxu0
    %v1278 = vadd.f32 0.0, %v1277
    %1279 = vdwg.mxu0
    %v1280 = vadd.f32 %v1278, %v1168
    %v1281 = vadd.f32 %v1280, %v155
    %v1282 = vxor.u32 %v1281, 2147483648
    %v1283 = vmul.f32 %v1282, 1.442695
    %v1284 = vpow.pop %v1283
    %v1285 = vadd.f32 %v1284, 1.0
    %v1286 = vrcp.pop %v1285
    %v1287 = vmul.f32 %v1285, %v1286
    %v1288 = vsub.f32 1.0, %v1287
    %v1289 = vmul.f32 %v1286, %v1288
    %v1290 = vadd.f32 %v1286, %v1289
    %vm1291 = vweird.f32 %v1285
    %vm1292 = vweird.f32 %v1286
    %vm1293 = vmor %vm1291, %vm1292
    %v1294 = vsel %vm1293, %v1286, %v1290
    %v1295 = vand.u32 2147483647, %v1285
    %vm1296 = vcmp.eq.f32.partialorder %v1295, 8.507059e+37
    %v1297 = vand.u32 %v1285, 2147483648
    %v1298 = vor.u32 1.1754944e-38, %v1297
    %v1299 = vsel %vm1296, %v1298, %v1294
    %v1300 = vmul.f32 1.0, %v1299
    %v1301 = vtanh.pop %v1281
    %v1302 = vmul.f32 %v1300, %v1138
    %1304 = vrot.lane.b32.xlu0 %v1301, 64
    %v1305 = vpop.permute.xlu0 %1304
    %v1307 = vmul.f32 %v1300, %v1305
    %1309 = vrot.lane.b32.xlu0 %v1307, 32
    %v1310 = vpop.permute.xlu0 %1309
    %v1312 = vadd.f32 %v1302, %v1310
    %v1313 = vtanh.pop %v1312
    %1315 = vrot.lane.b32.xlu0 %v1313, 64
    %v1316 = vpop.permute.xlu0 %1315
    %v1318 = vmul.f32 %v1300, %v1316
    %1320 = vrot.lane.b32.xlu0 %v1318, 32
    %v1321 = vpop.permute.xlu0 %1320
    %v1322 = vsel %vm101, %v1321, 0
    %1324 = vmatpush.msra.mxu0 0.0
    %1325 = vmatpush.msra.mxu0 0.0
    %1326 = vmatpush.msra.mxu0 0.0
    %1327 = vmatpush.msra.mxu0 0.0
    %1328 = vmatpush.msra.mxu0 0.0
    %1329 = vmatpush.msra.mxu0 0.0
    %1330 = vmatpush.msra.mxu0 0.0
    %1331 = vmatpush.msra.mxu0 0.0
    %1332 = vmatpush.msra.mxu0 0.0
    %1333 = vmatpush.msra.mxu0 0.0
    %1334 = vmatpush.msra.mxu0 0.0
    %1335 = vmatpush.msra.mxu0 0.0
    %1336 = vmatpush.msra.mxu0 %v151
    %1337 = vmatpush.msra.mxu0 %v149
    %1338 = vmatpush.msra.mxu0 %v147
    %1339 = vmatpush.msra.mxu0 %v145
    %1340 = vmatmul.f32.gmra.mxu0 %v1322
    %v1341 = vpop.f32.mrf.mxu0
    %v1342 = vadd.f32 0.0, %v1341
    %1343 = vdwg.mxu0
    %1344 = vmatpush.msra.mxu0 0.0
    %1345 = vmatpush.msra.mxu0 0.0
    %1346 = vmatpush.msra.mxu0 0.0
    %1347 = vmatpush.msra.mxu0 0.0
    %1348 = vmatpush.msra.mxu0 0.0
    %1349 = vmatpush.msra.mxu0 0.0
    %1350 = vmatpush.msra.mxu0 0.0
    %1351 = vmatpush.msra.mxu0 0.0
    %1352 = vmatpush.msra.mxu0 0.0
    %1353 = vmatpush.msra.mxu0 0.0
    %1354 = vmatpush.msra.mxu0 0.0
    %1355 = vmatpush.msra.mxu0 0.0
    %1356 = vmatpush.msra.mxu0 %v152
    %1357 = vmatpush.msra.mxu0 %v150
    %1358 = vmatpush.msra.mxu0 %v148
    %1359 = vmatpush.msra.mxu0 %v146
    %1360 = vmatmul.f32.gmra.mxu0 %v1322
    %v1361 = vpop.f32.mrf.mxu0
    %v1362 = vadd.f32 0.0, %v1361
    %1363 = vdwg.mxu0
    %v1365 = vrot.slane %v1258, 2
    %v1367 = vadd.f32 %v132, %v1365
    %v1368 = vxor.u32 %v1367, 2147483648
    %v1369 = vmul.f32 %v1368, 1.442695
    %v1370 = vpow.pop %v1369
    %v1371 = vadd.f32 %v1370, 1.0
    %v1372 = vrcp.pop %v1371
    %v1373 = vmul.f32 %v1371, %v1372
    %v1374 = vsub.f32 1.0, %v1373
    %v1375 = vmul.f32 %v1372, %v1374
    %v1376 = vadd.f32 %v1372, %v1375
    %vm1377 = vweird.f32 %v1371
    %vm1378 = vweird.f32 %v1372
    %vm1379 = vmor %vm1377, %vm1378
    %v1380 = vsel %vm1379, %v1372, %v1376
    %v1381 = vand.u32 2147483647, %v1371
    %vm1382 = vcmp.eq.f32.partialorder %v1381, 8.507059e+37
    %v1383 = vand.u32 %v1371, 2147483648
    %v1384 = vor.u32 1.1754944e-38, %v1383
    %v1385 = vsel %vm1382, %v1384, %v1380
    %v1386 = vmul.f32 1.0, %v1385
    %v1387 = vtanh.pop %v1367
    %v1389 = vrot.slane %v1227, 6
    %v1391 = vmul.f32 %v1386, %v1389
    %1393 = vrot.lane.b32.xlu0 %v1387, 64
    %v1394 = vpop.permute.xlu0 %1393
    %v1396 = vmul.f32 %v1386, %v1394
    %1398 = vrot.lane.b32.xlu0 %v1396, 32
    %v1399 = vpop.permute.xlu0 %1398
    %v1401 = vadd.f32 %v1391, %v1399
    %v1402 = vtanh.pop %v1401
    %1404 = vrot.lane.b32.xlu0 %v1402, 64
    %v1405 = vpop.permute.xlu0 %1404
    %v1407 = vmul.f32 %v1386, %v1405
    %v1409 = vrot.slane %v1407, 6
    %1410 = vrot.lane.b32.xlu0 %v1409, 32
    %v1411 = vpop.permute.xlu0 %1410
    %v1412 = vsel %vm101, %v1411, 0
    %1414 = vmatpush.msra.mxu0 0.0
    %1415 = vmatpush.msra.mxu0 0.0
    %1416 = vmatpush.msra.mxu0 0.0
    %1417 = vmatpush.msra.mxu0 0.0
    %1418 = vmatpush.msra.mxu0 0.0
    %1419 = vmatpush.msra.mxu0 0.0
    %1420 = vmatpush.msra.mxu0 0.0
    %1421 = vmatpush.msra.mxu0 0.0
    %1422 = vmatpush.msra.mxu0 0.0
    %1423 = vmatpush.msra.mxu0 0.0
    %1424 = vmatpush.msra.mxu0 0.0
    %1425 = vmatpush.msra.mxu0 0.0
    %1426 = vmatpush.msra.mxu0 %v143
    %1427 = vmatpush.msra.mxu0 %v141
    %1428 = vmatpush.msra.mxu0 %v139
    %1429 = vmatpush.msra.mxu0 %v137
    %1430 = vmatmul.f32.gmra.mxu0 %v1412
    %v1431 = vpop.f32.mrf.mxu0
    %v1432 = vadd.f32 0.0, %v1431
    %1433 = vdwg.mxu0
    %1434 = vmatpush.msra.mxu0 0.0
    %1435 = vmatpush.msra.mxu0 0.0
    %1436 = vmatpush.msra.mxu0 0.0
    %1437 = vmatpush.msra.mxu0 0.0
    %1438 = vmatpush.msra.mxu0 0.0
    %1439 = vmatpush.msra.mxu0 0.0
    %1440 = vmatpush.msra.mxu0 0.0
    %1441 = vmatpush.msra.mxu0 0.0
    %1442 = vmatpush.msra.mxu0 0.0
    %1443 = vmatpush.msra.mxu0 0.0
    %1444 = vmatpush.msra.mxu0 0.0
    %1445 = vmatpush.msra.mxu0 0.0
    %1446 = vmatpush.msra.mxu0 %v144
    %1447 = vmatpush.msra.mxu0 %v142
    %1448 = vmatpush.msra.mxu0 %v140
    %1449 = vmatpush.msra.mxu0 %v138
    %1450 = vmatmul.f32.gmra.mxu0 %v1412
    %v1451 = vpop.f32.mrf.mxu0
    %v1452 = vadd.f32 0.0, %v1451
    %1453 = vdwg.mxu0
    %v1454 = vadd.f32 %v1452, %v1342
    %v1455 = vadd.f32 %v1454, %v155
    %v1456 = vxor.u32 %v1455, 2147483648
    %v1457 = vmul.f32 %v1456, 1.442695
    %v1458 = vpow.pop %v1457
    %v1459 = vadd.f32 %v1458, 1.0
    %v1460 = vrcp.pop %v1459
    %v1461 = vmul.f32 %v1459, %v1460
    %v1462 = vsub.f32 1.0, %v1461
    %v1463 = vmul.f32 %v1460, %v1462
    %v1464 = vadd.f32 %v1460, %v1463
    %vm1465 = vweird.f32 %v1459
    %vm1466 = vweird.f32 %v1460
    %vm1467 = vmor %vm1465, %vm1466
    %v1468 = vsel %vm1467, %v1460, %v1464
    %v1469 = vand.u32 2147483647, %v1459
    %vm1470 = vcmp.eq.f32.partialorder %v1469, 8.507059e+37
    %v1471 = vand.u32 %v1459, 2147483648
    %v1472 = vor.u32 1.1754944e-38, %v1471
    %v1473 = vsel %vm1470, %v1472, %v1468
    %v1474 = vmul.f32 1.0, %v1473
    %v1475 = vtanh.pop %v1455
    %v1476 = vmul.f32 %v1474, %v1312
    %1478 = vrot.lane.b32.xlu0 %v1475, 64
    %v1479 = vpop.permute.xlu0 %1478
    %v1481 = vmul.f32 %v1474, %v1479
    %1483 = vrot.lane.b32.xlu0 %v1481, 32
    %v1484 = vpop.permute.xlu0 %1483
    %v1486 = vadd.f32 %v1476, %v1484
    %v1487 = vtanh.pop %v1486
    %1489 = vrot.lane.b32.xlu0 %v1487, 64
    %v1490 = vpop.permute.xlu0 %1489
    %v1492 = vmul.f32 %v1474, %v1490
    %1494 = vrot.lane.b32.xlu0 %v1492, 32
    %v1495 = vpop.permute.xlu0 %1494
    %v1496 = vsel %vm101, %v1495, 0
    %1498 = vmatpush.msra.mxu0 0.0
    %1499 = vmatpush.msra.mxu0 0.0
    %1500 = vmatpush.msra.mxu0 0.0
    %1501 = vmatpush.msra.mxu0 0.0
    %1502 = vmatpush.msra.mxu0 0.0
    %1503 = vmatpush.msra.mxu0 0.0
    %1504 = vmatpush.msra.mxu0 0.0
    %1505 = vmatpush.msra.mxu0 0.0
    %1506 = vmatpush.msra.mxu0 0.0
    %1507 = vmatpush.msra.mxu0 0.0
    %1508 = vmatpush.msra.mxu0 0.0
    %1509 = vmatpush.msra.mxu0 0.0
    %1510 = vmatpush.msra.mxu0 %v151
    %1511 = vmatpush.msra.mxu0 %v149
    %1512 = vmatpush.msra.mxu0 %v147
    %1513 = vmatpush.msra.mxu0 %v145
    %1514 = vmatmul.f32.gmra.mxu0 %v1496
    %v1515 = vpop.f32.mrf.mxu0
    %v1516 = vadd.f32 0.0, %v1515
    %1517 = vdwg.mxu0
    %1518 = vmatpush.msra.mxu0 0.0
    %1519 = vmatpush.msra.mxu0 0.0
    %1520 = vmatpush.msra.mxu0 0.0
    %1521 = vmatpush.msra.mxu0 0.0
    %1522 = vmatpush.msra.mxu0 0.0
    %1523 = vmatpush.msra.mxu0 0.0
    %1524 = vmatpush.msra.mxu0 0.0
    %1525 = vmatpush.msra.mxu0 0.0
    %1526 = vmatpush.msra.mxu0 0.0
    %1527 = vmatpush.msra.mxu0 0.0
    %1528 = vmatpush.msra.mxu0 0.0
    %1529 = vmatpush.msra.mxu0 0.0
    %1530 = vmatpush.msra.mxu0 %v152
    %1531 = vmatpush.msra.mxu0 %v150
    %1532 = vmatpush.msra.mxu0 %v148
    %1533 = vmatpush.msra.mxu0 %v146
    %1534 = vmatmul.f32.gmra.mxu0 %v1496
    %v1535 = vpop.f32.mrf.mxu0
    %v1536 = vadd.f32 0.0, %v1535
    %1537 = vdwg.mxu0
    %v1538 = vadd.f32 %v135, %v1432
    %v1539 = vxor.u32 %v1538, 2147483648
    %v1540 = vmul.f32 %v1539, 1.442695
    %v1541 = vpow.pop %v1540
    %v1542 = vadd.f32 %v1541, 1.0
    %v1543 = vrcp.pop %v1542
    %v1544 = vmul.f32 %v1542, %v1543
    %v1545 = vsub.f32 1.0, %v1544
    %v1546 = vmul.f32 %v1543, %v1545
    %v1547 = vadd.f32 %v1543, %v1546
    %vm1548 = vweird.f32 %v1542
    %vm1549 = vweird.f32 %v1543
    %vm1550 = vmor %vm1548, %vm1549
    %v1551 = vsel %vm1550, %v1543, %v1547
    %v1552 = vand.u32 2147483647, %v1542
    %vm1553 = vcmp.eq.f32.partialorder %v1552, 8.507059e+37
    %v1554 = vand.u32 %v1542, 2147483648
    %v1555 = vor.u32 1.1754944e-38, %v1554
    %v1556 = vsel %vm1553, %v1555, %v1551
    %v1557 = vmul.f32 1.0, %v1556
    %v1558 = vtanh.pop %v1538
    %v1560 = vrot.slane %v1401, 6
    %v1562 = vmul.f32 %v1557, %v1560
    %1564 = vrot.lane.b32.xlu0 %v1558, 64
    %v1565 = vpop.permute.xlu0 %1564
    %v1567 = vmul.f32 %v1557, %v1565
    %1569 = vrot.lane.b32.xlu0 %v1567, 32
    %v1570 = vpop.permute.xlu0 %1569
    %v1572 = vadd.f32 %v1562, %v1570
    %v1573 = vtanh.pop %v1572
    %1575 = vrot.lane.b32.xlu0 %v1573, 64
    %v1576 = vpop.permute.xlu0 %1575
    %v1578 = vmul.f32 %v1557, %v1576
    %1580 = vrot.lane.b32.xlu0 %v1578, 32
    %v1581 = vpop.permute.xlu0 %1580
    %v1582 = vsel %vm101, %v1581, 0
    %1584 = vmatpush.msra.mxu0 0.0
    %1585 = vmatpush.msra.mxu0 0.0
    %1586 = vmatpush.msra.mxu0 0.0
    %1587 = vmatpush.msra.mxu0 0.0
    %1588 = vmatpush.msra.mxu0 0.0
    %1589 = vmatpush.msra.mxu0 0.0
    %1590 = vmatpush.msra.mxu0 0.0
    %1591 = vmatpush.msra.mxu0 0.0
    %1592 = vmatpush.msra.mxu0 0.0
    %1593 = vmatpush.msra.mxu0 0.0
    %1594 = vmatpush.msra.mxu0 0.0
    %1595 = vmatpush.msra.mxu0 0.0
    %1596 = vmatpush.msra.mxu0 %v144
    %1597 = vmatpush.msra.mxu0 %v142
    %1598 = vmatpush.msra.mxu0 %v140
    %1599 = vmatpush.msra.mxu0 %v138
    %1600 = vmatmul.f32.gmra.mxu0 %v1582
    %v1601 = vpop.f32.mrf.mxu0
    %v1602 = vadd.f32 0.0, %v1601
    %1603 = vdwg.mxu0
    %v1604 = vadd.f32 %v1602, %v1516
    %v1605 = vadd.f32 %v1604, %v155
    %v1606 = vxor.u32 %v1605, 2147483648
    %v1607 = vmul.f32 %v1606, 1.442695
    %v1608 = vpow.pop %v1607
    %v1609 = vadd.f32 %v1608, 1.0
    %v1610 = vrcp.pop %v1609
    %v1611 = vmul.f32 %v1609, %v1610
    %v1612 = vsub.f32 1.0, %v1611
    %v1613 = vmul.f32 %v1610, %v1612
    %v1614 = vadd.f32 %v1610, %v1613
    %vm1615 = vweird.f32 %v1609
    %vm1616 = vweird.f32 %v1610
    %vm1617 = vmor %vm1615, %vm1616
    %v1618 = vsel %vm1617, %v1610, %v1614
    %v1619 = vand.u32 2147483647, %v1609
    %vm1620 = vcmp.eq.f32.partialorder %v1619, 8.507059e+37
    %v1621 = vand.u32 %v1609, 2147483648
    %v1622 = vor.u32 1.1754944e-38, %v1621
    %v1623 = vsel %vm1620, %v1622, %v1618
    %v1624 = vmul.f32 1.0, %v1623
    %v1625 = vtanh.pop %v1605
    %v1626 = vmul.f32 %v1624, %v1486
    %1628 = vrot.lane.b32.xlu0 %v1625, 64
    %v1629 = vpop.permute.xlu0 %1628
    %v1631 = vmul.f32 %v1624, %v1629
    %1633 = vrot.lane.b32.xlu0 %v1631, 32
    %v1634 = vpop.permute.xlu0 %1633
    %v1636 = vadd.f32 %v1626, %v1634
    %v1637 = vtanh.pop %v1636
    %1639 = vrot.lane.b32.xlu0 %v1637, 64
    %v1640 = vpop.permute.xlu0 %1639
    %v1642 = vmul.f32 %v1624, %v1640
    %1644 = vrot.lane.b32.xlu0 %v1642, 32
    %v1645 = vpop.permute.xlu0 %1644
    %v1646 = vsel %vm101, %v1645, 0
    %1648 = vmatpush.msra.mxu0 0.0
    %1649 = vmatpush.msra.mxu0 0.0
    %1650 = vmatpush.msra.mxu0 0.0
    %1651 = vmatpush.msra.mxu0 0.0
    %1652 = vmatpush.msra.mxu0 0.0
    %1653 = vmatpush.msra.mxu0 0.0
    %1654 = vmatpush.msra.mxu0 0.0
    %1655 = vmatpush.msra.mxu0 0.0
    %1656 = vmatpush.msra.mxu0 0.0
    %1657 = vmatpush.msra.mxu0 0.0
    %1658 = vmatpush.msra.mxu0 0.0
    %1659 = vmatpush.msra.mxu0 0.0
    %1660 = vmatpush.msra.mxu0 %v152
    %1661 = vmatpush.msra.mxu0 %v150
    %1662 = vmatpush.msra.mxu0 %v148
    %1663 = vmatpush.msra.mxu0 %v146
    %1664 = vmatmul.f32.gmra.mxu0 %v1646
    %v1665 = vpop.f32.mrf.mxu0
    %v1666 = vadd.f32 0.0, %v1665
    %1667 = vdwg.mxu0
    %v1669 = vrot.slane %v496, 6
    %v1672 = vrot.slane %v670, 4
    %v1675 = vrot.slane %v844, 2
    %v1678 = vrot.slane %v1188, 6
    %v1681 = vrot.slane %v1362, 4
    %v1684 = vrot.slane %v1536, 2
    %vm1686 = vcmask 1041408
    %v1687 = vsel %vm1686, %v322, %v1669
    %vm1688 = vcmask 1043456
    %v1689 = vsel %vm1688, %v1687, %v1672
    %vm1690 = vcmask 1045504
    %v1691 = vsel %vm1690, %v1689, %v1675
    %v1692 = vsel %vm1686, %v1014, %v1678
    %v1693 = vsel %vm1688, %v1692, %v1681
    %v1694 = vsel %vm1690, %v1693, %v1684
    %v1695 = vld [vmem:[%s3] sm:$0x1]
    %v1697 = vperm.slane %v1695, 0
    %v1699 = vadd.f32 %v1691, %v1697
    %v1700 = vadd.f32 %v1694, %v1697
    %v1701 = vadd.f32 %v1666, %v1697
    %1702 = vst [vmem:[#allocation10] sm:$0xff] %v1699
    %1703 = vst [vmem:[#allocation10 + $0x8] sm:$0xff] %v1700
    %1704 = vst [vmem:[#allocation10 + $0x10] sm:$0x3] %v1701
    // Predicated region
    $region46: #{tpu_custom_call.1} parent=1 // pred_check
      _
    $region47: #{tpu_custom_call.1} parent=1 // pred_check_branch
      %1706 = sbr.rel (0) target = $region49
    $region48: #{tpu_custom_call.1} parent=1 // pred_region
      %1708 = vsyncadd [#allocation4], 0
      %s1709 = sshll.u32 [#allocation10], 4
      %s1710 = int_to_ptr.vmem [resolvable:$true] %s1709
      %s1711 = sshll.u32 %s7, 4
      %s1712 = int_to_ptr.hbm [resolvable:$true] %s1711
      %1717 = dma.vmem_to_hbm [thread:$0]  %s1710, 384, %s1712, [#allocation4], 128, 128, 8
    $region49: #{tpu_custom_call.1} parent=1 // pred_fallthru
      _
    // Predicated region
    $region50: #{tpu_custom_call.1} parent=1 // pred_check
      _
    $region51: #{tpu_custom_call.1} parent=1 // pred_check_branch
      %1719 = sbr.rel (0) target = $region53
    $region52: #{tpu_custom_call.1} parent=1 // pred_region
      %1721 = dma.done [#allocation4], 384
    $region53: #{tpu_custom_call.1} parent=1 // pred_fallthru
      _
    %1722 = vsyncpa [#allocation3], 1
    %1723 = vsyncpa [#allocation6], 1
    %1724 = vsyncpa [#allocation9], 1
    %1725 = vsyncpa [#allocation4], 1

</llo_original>
